<compile_context>
chip_gen: v6e
topology: v6e:2x2x1
jax: 0.10.0
libtpu: 0.0.40
codegen_flags: <defaults>
</compile_context>

<pallas_src>
import functools
import math

import jax
import jax.numpy as jnp
from jax import lax
from jax.experimental import pallas as pl
from jax.experimental.pallas import tpu as pltpu


_MASK_VALUE = -1e30  # finite sentinel (no NaN risk; causal diagonal is never fully masked)


# ----------------------------- in-kernel helpers -----------------------------

def _layernorm(x, gamma, beta, eps=1e-5):
    # x: (N, D) f32, gamma/beta: (1, D).  All-f32 elementwise (VPU).
    mu = jnp.mean(x, axis=-1, keepdims=True)
    var = jnp.mean((x - mu) ** 2, axis=-1, keepdims=True)
    return (x - mu) * lax.rsqrt(var + eps) * gamma + beta


def _gelu_exact(x):
    # nn.GELU() default = exact erf formulation.
    return 0.5 * x * (1.0 + lax.erf(x * (1.0 / math.sqrt(2.0))))


# --------------------------- hardware / feature probes ------------------------

@functools.lru_cache(maxsize=None)
def _vmem_cap_bytes():
    try:
        return int(pltpu.get_tpu_info().vmem_capacity_bytes)
    except Exception:
        return 64 << 20  # conservative fallback (v7x per-TC VMEM)


_SINGLE_BUFFER_OK = None


def _single_buffer_supported():
    """One-time probe: can this jax build single-buffer an input via pl.Buffered(1)?"""
    global _SINGLE_BUFFER_OK
    if _SINGLE_BUFFER_OK is None:
        def copy_kernel(x_ref, o_ref):
            o_ref[...] = x_ref[...]
        try:
            spec = pl.BlockSpec((8, 128), lambda i: (0, 0), pipeline_mode=pl.Buffered(1))
            out = pl.pallas_call(
                copy_kernel,
                out_shape=jax.ShapeDtypeStruct((8, 128), jnp.float32),
                grid=(2,),
                in_specs=[spec],
                out_specs=pl.BlockSpec((8, 128), lambda i: (0, 0)),
            )(jnp.zeros((8, 128), jnp.float32))
            jax.block_until_ready(out)
            _SINGLE_BUFFER_OK = True
        except Exception:
            _SINGLE_BUFFER_OK = False
    return _SINGLE_BUFFER_OK


# ------------------------- TransformerBlock kernel ----------------------------

def transformer_block_kernel(
    x_ref,                      # (1, block_q, D) f32
    g1_ref, b1_ref,             # (1, D) ln1
    g2_ref, b2_ref,             # (1, D) ln2
    wqkv_ref,                   # (D, 3D) bf16, packed [Q*scale | K | V]
    wo_ref,                     # (D, D) bf16 output projection
    bo_ref,                     # (1, D) f32
    w1_ref, bf1_ref,            # (D, H) bf16, (1, H) f32
    w2_ref, bf2_ref,            # (H, D) bf16, (1, D) f32
    o_ref,                      # (1, block_q, D)
    qkv_ref,                    # scratch (T, 3D) bf16, persists across qi for a batch row
    ctx_ref,                    # scratch (block_q, D) bf16 attention context
    *, num_heads, block_q,
):
    qi = pl.program_id(1)
    D = x_ref.shape[2]
    dh = D // num_heads
    r0 = pl.multiple_of(qi * block_q, block_q)

    # ---- LN1 + fused QKV for this block's rows (Q pre-scaled in the packed weight) ----
    x_blk = x_ref[0].astype(jnp.float32)                               # (bq, D)
    h1 = _layernorm(x_blk, g1_ref[...], b1_ref[...])
    qkv_blk = jnp.dot(h1.astype(jnp.bfloat16), wqkv_ref[...],
                      preferred_element_type=jnp.float32)              # (bq, 3D) f32
    qkv_ref[pl.ds(r0, block_q), :] = qkv_blk.astype(jnp.bfloat16)      # append to seq scratch

    # ---- flash-style causal attention: kv tiles 0..qi (above-diagonal never touched) ----
    rows = lax.broadcasted_iota(jnp.int32, (block_q, block_q), 0) + qi * block_q
    cols = lax.broadcasted_iota(jnp.int32, (block_q, block_q), 1)
    for hd in range(num_heads):
        q_h = qkv_blk[:, hd * dh:(hd + 1) * dh].astype(jnp.bfloat16)   # (bq, dh)

        def kv_step(t, carry, _hd=hd, _q=q_h):
            m, l, acc = carry
            k0 = pl.multiple_of(t * block_q, block_q)
            k_t = qkv_ref[pl.ds(k0, block_q), pl.ds(D + _hd * dh, dh)]      # (bkv, dh) bf16
            v_t = qkv_ref[pl.ds(k0, block_q), pl.ds(2 * D + _hd * dh, dh)]  # (bkv, dh) bf16
            s = lax.dot_general(_q, k_t, (((1,), (1,)), ((), ())),
                                preferred_element_type=jnp.float32)         # (bq, bkv) f32
            s = jnp.where(cols + k0 <= rows, s, _MASK_VALUE)
            m_new = jnp.maximum(m, jnp.max(s, axis=-1, keepdims=True))
            alpha = jnp.exp(m - m_new)                                      # EUP
            p = jnp.exp(s - m_new)                                          # EUP
            l_new = alpha * l + jnp.sum(p, axis=-1, keepdims=True)
            acc_new = alpha * acc + jnp.dot(p.astype(jnp.bfloat16), v_t,
                                            preferred_element_type=jnp.float32)
            return m_new, l_new, acc_new

        m0 = jnp.full((block_q, 1), _MASK_VALUE, jnp.float32)
        l0 = jnp.zeros((block_q, 1), jnp.float32)
        a0 = jnp.zeros((block_q, dh), jnp.float32)
        m_f, l_f, acc_f = lax.fori_loop(0, qi + 1, kv_step, (m0, l0, a0))
        # TODO(synk): when d_head % 128 != 0, pad d_head to 128 lanes in the packed layout
        # to avoid unaligned lane slices / masked stores on this write.
        ctx_ref[:, hd * dh:(hd + 1) * dh] = (acc_f / l_f).astype(jnp.bfloat16)

    # ---- output projection: ONE K=D matmul (full MXU depth) + residual ----
    attn = jnp.dot(ctx_ref[...], wo_ref[...], preferred_element_type=jnp.float32)
    xr = x_blk + attn + bo_ref[...]
    # TODO(synk): dropout1/dropout2 are identity (eval-mode semantics).

    # ---- LN2 + GELU MLP for this block ((bq, H) intermediate only) ----
    h2 = _layernorm(xr, g2_ref[...], b2_ref[...])
    f = jnp.dot(h2.astype(jnp.bfloat16), w1_ref[...],
                preferred_element_type=jnp.float32) + bf1_ref[...]
    f = _gelu_exact(f)
    f = jnp.dot(f.astype(jnp.bfloat16), w2_ref[...],
                preferred_element_type=jnp.float32) + bf2_ref[...]
    o_ref[0] = (xr + f).astype(o_ref.dtype)


# ------------------------------ block wrapper ---------------------------------

def _pick_block_q(T):
    # Re-swept per generation: smaller target on 64 MiB-VMEM chips (v7x).
    target = 256 if _vmem_cap_bytes() >= (96 << 20) else 128
    if T <= target:
        return T
    for cand in (256, 128, 64, 32, 16, 8):
        if cand <= target and T % cand == 0:
            return cand
    return T  # monolithic fallback for awkward T


def _block_vmem_limit_bytes(T, D, H, block_q, weight_bufs):
    bf16, f32 = 2, 4
    weights = weight_bufs * bf16 * (3 * D * D + D * D + D * H + H * D)
    scratch = bf16 * (T * 3 * D + block_q * D)
    io = 2 * f32 * 2 * block_q * D                     # x + out, double-buffered
    small = 2 * f32 * (7 * D + H)                      # ln params + biases
    trans = f32 * block_q * (6 * D + 2 * H + 2 * block_q)
    est = weights + scratch + io + small + trans + (6 << 20)
    cap = _vmem_cap_bytes() - (8 << 20)
    return int(max(min(est, cap), 32 << 20))


def transformer_block(x, params, *, num_heads, block_q=None):
    """x: (B, T, D) f32.  params: dict from init_block_params (math-layout weights)."""
    B, T, D = x.shape
    H = params["w1"].shape[1]
    assert D % num_heads == 0
    dh = D // num_heads
    if block_q is None:
        block_q = _pick_block_q(T)
    assert T % block_q == 0
    n_q = T // block_q

    # weight layout plumbing (bf16 for the MXU); 1/sqrt(d_head) folded into Q columns
    scale = dh ** (-0.5)
    wqkv = jnp.concatenate([params["wq"] * scale, params["wk"], params["wv"]],
                           axis=1).astype(jnp.bfloat16)          # (D, 3D) [Q*s | K | V]
    wo = params["wo"].astype(jnp.bfloat16)
    w1 = params["w1"].astype(jnp.bfloat16)
    w2 = params["w2"].astype(jnp.bfloat16)

    wmode = pl.Buffered(1) if _single_buffer_supported() else None
    weight_bufs = 1 if wmode is not None else 2

    def wspec(shape):                                  # big constant weights
        idx = lambda b, qi: (0,) * len(shape)
        if wmode is None:
            return pl.BlockSpec(shape, idx)
        return pl.BlockSpec(shape, idx, pipeline_mode=wmode)

    def cspec(shape):                                  # small constant params
        return pl.BlockSpec(shape, lambda b, qi: (0,) * len(shape))

    return pl.pallas_call(
        functools.partial(transformer_block_kernel,
                          num_heads=num_heads, block_q=block_q),
        out_shape=jax.ShapeDtypeStruct((B, T, D), x.dtype),
        grid_spec=pltpu.PrefetchScalarGridSpec(
            num_scalar_prefetch=0,
            grid=(B, n_q),
            in_specs=[
                pl.BlockSpec((1, block_q, D), lambda b, qi: (b, qi, 0)),   # x
                cspec((1, D)), cspec((1, D)),                              # ln1
                cspec((1, D)), cspec((1, D)),                              # ln2
                wspec((D, 3 * D)),                                         # fused qkv
                wspec((D, D)),                                             # wo
                cspec((1, D)),                                             # bo
                wspec((D, H)), cspec((1, H)),                              # w1, bf1
                wspec((H, D)), cspec((1, D)),                              # w2, bf2
            ],
            out_specs=pl.BlockSpec((1, block_q, D), lambda b, qi: (b, qi, 0)),
            scratch_shapes=[
                pltpu.VMEM((T, 3 * D), jnp.bfloat16),     # packed QKV, whole sequence
                pltpu.VMEM((block_q, D), jnp.bfloat16),   # per-block attention context
            ],
        ),
        compiler_params=pltpu.CompilerParams(
            dimension_semantics=("parallel", "arbitrary"),
            vmem_limit_bytes=_block_vmem_limit_bytes(T, D, H, block_q, weight_bufs)),
    )(
        x,
        params["g1"], params["b1"], params["g2"], params["b2"],
        wqkv, wo, params["bo"],
        w1, params["bf1"], w2, params["bf2"],
    )


# --------------------------- final LN + LM head kernel -------------------------

def _lm_head_kernel(x_ref, g_ref, b_ref, w_ref, bl_ref, o_ref, h_ref):
    # x_ref: (1, T, D) f32 (resident across vocab tiles); w_ref: (D, tv) bf16;
    # bl_ref: (1, tv) f32; o_ref: (1, T, tv) f32; h_ref: (T, D) bf16 LN'd activations.
    @pl.when(pl.program_id(1) == 0)
    def _():
        h_ref[...] = _layernorm(x_ref[0].astype(jnp.float32),
                                g_ref[...], b_ref[...]).astype(jnp.bfloat16)
    logits = jnp.dot(h_ref[...], w_ref[...],
                     preferred_element_type=jnp.float32) + bl_ref[...]
    o_ref[0] = logits.astype(o_ref.dtype)


def _lm_head_vmem_bytes(T, D, tile_v):
    bf16, f32 = 2, 4
    est = (2 * f32 * T * D            # x double-buffered
           + 2 * bf16 * D * tile_v    # w_lm tiles double-buffered (pipelined)
           + 2 * f32 * T * tile_v     # out double-buffered
           + bf16 * T * D             # LN scratch
           + f32 * T * tile_v         # logits transient
           + (6 << 20))
    cap = _vmem_cap_bytes() - (8 << 20)
    return int(max(min(est, cap), 32 << 20))


def lm_head(x, gamma, beta, w_lm, b_lm, *, tile_v=None):
    B, T, D = x.shape
    V = w_lm.shape[1]
    if tile_v is None:
        tile_v = V if V <= 4096 else 2048
    n_v = pl.cdiv(V, tile_v)
    Vp = n_v * tile_v
    if Vp != V:
        # TODO(synk): ragged vocab handled by zero-padding the LM head; logits sliced below.
        w_lm = jnp.pad(w_lm, ((0, 0), (0, Vp - V)))
        b_lm = jnp.pad(b_lm, ((0, 0), (0, Vp - V)))

    out = pl.pallas_call(
        _lm_head_kernel,
        out_shape=jax.ShapeDtypeStruct((B, T, Vp), jnp.float32),
        grid_spec=pltpu.PrefetchScalarGridSpec(
            num_scalar_prefetch=0,
            grid=(B, n_v),
            in_specs=[
                pl.BlockSpec((1, T, D), lambda b, vi: (b, 0, 0)),
                pl.BlockSpec((1, D), lambda b, vi: (0, 0)),
                pl.BlockSpec((1, D), lambda b, vi: (0, 0)),
                pl.BlockSpec((D, tile_v), lambda b, vi: (0, vi)),
                pl.BlockSpec((1, tile_v), lambda b, vi: (0, vi)),
            ],
            out_specs=pl.BlockSpec((1, T, tile_v), lambda b, vi: (b, 0, vi)),
            scratch_shapes=[pltpu.VMEM((T, D), jnp.bfloat16)],
        ),
        compiler_params=pltpu.CompilerParams(
            dimension_semantics=("parallel", "arbitrary"),
            vmem_limit_bytes=_lm_head_vmem_bytes(T, D, tile_v)),
    )(x, gamma, beta, w_lm.astype(jnp.bfloat16), b_lm)
    return out[:, :, :V] if Vp != V else out


# ------------------------------ full model forward -----------------------------

def dante_forward(idx, p, *, num_heads, block_size):
    # TODO(synk): token/position embedding gather + add are tiny mem-bound ops left to XLA.
    idx = idx[:, -block_size:]
    T = idx.shape[1]
    x = jnp.take(p["tok_emb"], idx, axis=0) + p["pos_emb"][:T][None]
    for bp in p["blocks"]:
        x = transformer_block(x, bp, num_heads=num_heads)
    return lm_head(x, p["gf"], p["bf"], p["w_lm"], p["b_lm"])


# --------------------------- pure-JAX references (f32) --------------------------

def _ln_ref(x, g, b, eps=1e-5):
    mu = jnp.mean(x, -1, keepdims=True)
    var = jnp.mean((x - mu) ** 2, -1, keepdims=True)
    return (x - mu) / jnp.sqrt(var + eps) * g + b


def transformer_block_ref(x, p, *, num_heads):
    B, T, D = x.shape
    dh = D // num_heads
    h = _ln_ref(x, p["g1"], p["b1"])
    q, k, v = h @ p["wq"], h @ p["wk"], h @ p["wv"]
    mask = jnp.tril(jnp.ones((T, T), bool))
    outs = []
    for i in range(num_heads):
        sl = slice(i * dh, (i + 1) * dh)
        s = jnp.einsum("btd,bsd->bts", q[..., sl], k[..., sl]) * dh ** -0.5
        s = jnp.where(mask, s, -jnp.inf)
        outs.append(jax.nn.softmax(s, -1) @ v[..., sl])
    attn = jnp.concatenate(outs, -1) @ p["wo"] + p["bo"]
    x = x + attn
    h2 = _ln_ref(x, p["g2"], p["b2"])
    f = h2 @ p["w1"] + p["bf1"]
    f = 0.5 * f * (1.0 + lax.erf(f / jnp.sqrt(2.0)))
    return x + f @ p["w2"] + p["bf2"]


def dante_forward_ref(idx, p, *, num_heads, block_size):
    idx = idx[:, -block_size:]
    T = idx.shape[1]
    x = p["tok_emb"][idx] + p["pos_emb"][:T][None]
    for bp in p["blocks"]:
        x = transformer_block_ref(x, bp, num_heads=num_heads)
    x = _ln_ref(x, p["gf"], p["bf"])
    return x @ p["w_lm"] + p["b_lm"]


# --------------------------------- param init -----------------------------------

def init_block_params(key, d_model, ff_expansion):
    H = ff_expansion * d_model
    ks = jax.random.split(key, 7)
    s = 0.02
    return {
        "g1": jnp.ones((1, d_model), jnp.float32),
        "b1": jnp.zeros((1, d_model), jnp.float32),
        "g2": jnp.ones((1, d_model), jnp.float32),
        "b2": jnp.zeros((1, d_model), jnp.float32),
        "wq": s * jax.random.normal(ks[0], (d_model, d_model), jnp.float32),
        "wk": s * jax.random.normal(ks[1], (d_model, d_model), jnp.float32),
        "wv": s * jax.random.normal(ks[2], (d_model, d_model), jnp.float32),
        "wo": s * jax.random.normal(ks[3], (d_model, d_model), jnp.float32),
        "bo": s * jax.random.normal(ks[4], (1, d_model), jnp.float32),
        "w1": s * jax.random.normal(ks[5], (d_model, H), jnp.float32),
        "bf1": jnp.zeros((1, H), jnp.float32),
        "w2": s * jax.random.normal(ks[6], (H, d_model), jnp.float32),
        "bf2": jnp.zeros((1, d_model), jnp.float32),
    }


def init_dante_params(key, *, vocab_size, block_size, d_model, ff_expansion, num_blocks):
    ks = jax.random.split(key, num_blocks + 3)
    s = 0.02
    return {
        "tok_emb": s * jax.random.normal(ks[0], (vocab_size, d_model), jnp.float32),
        "pos_emb": s * jax.random.normal(ks[1], (block_size, d_model), jnp.float32),
        "blocks": [init_block_params(ks[2 + i], d_model, ff_expansion)
                   for i in range(num_blocks)],
        "gf": jnp.ones((1, d_model), jnp.float32),
        "bf": jnp.zeros((1, d_model), jnp.float32),
        "w_lm": s * jax.random.normal(ks[-1], (d_model, vocab_size), jnp.float32),
        "b_lm": jnp.zeros((1, vocab_size), jnp.float32),
    }


# ------------------------------------ main ---------------------------------------

if __name__ == "__main__":
    B = 2
    vocab_size = 64
    block_size = 8          # T
    d_model = 32
    num_heads = 4
    ff_expansion = 4
    num_blocks = 2

    key = jax.random.PRNGKey(0)
    k_idx, k_params, k_x = jax.random.split(key, 3)
    params = init_dante_params(k_params, vocab_size=vocab_size, block_size=block_size,
                               d_model=d_model, ff_expansion=ff_expansion,
                               num_blocks=num_blocks)
    idx = jax.random.randint(k_idx, (B, block_size), 0, vocab_size)

    # 1) single TransformerBlock kernel vs. f32 reference
    x = jax.random.normal(k_x, (B, block_size, d_model), jnp.float32)
    blk_params = params["blocks"][0]
    out_blk = jax.block_until_ready(
        transformer_block(x, blk_params, num_heads=num_heads))
    ref_blk = transformer_block_ref(x, blk_params, num_heads=num_heads)
    assert out_blk.shape == (B, block_size, d_model)
    assert jnp.allclose(out_blk, ref_blk, atol=2e-2, rtol=2e-2), "block mismatch vs reference"

    # 2) full DanteTransformer forward (embeddings -> blocks -> final LN -> LM head)
    logits = jax.block_until_ready(
        dante_forward(idx, params, num_heads=num_heads, block_size=block_size))
    logits_ref = dante_forward_ref(idx, params, num_heads=num_heads, block_size=block_size)
    assert logits.shape == (B, block_size, vocab_size)
    assert jnp.allclose(logits, logits_ref, atol=2e-2, rtol=2e-2), "logits mismatch vs reference"

    print("KERNEL_OK")
</pallas_src>

<mosaic_0001>
module attributes {stable_mosaic.version = 11 : i64} {
  func.func @copy_kernel(%arg0: i32, %arg1: memref<8x128xf32, #tpu.memory_space<vmem>>, %arg2: memref<8x128xf32, #tpu.memory_space<vmem>>) attributes {dimension_semantics = [#tpu.dimension_semantics<arbitrary>], iteration_bounds = array<i64: 2>, scalar_prefetch = 0 : i64, scratch_operands = 0 : i64, tpu.core_type = #tpu.core_type<tc>, window_params = [{pipeline_mode = #tpu.pipeline_mode<synchronous>, transform_indices = @transform_0, window_bounds = array<i64: 8, 128>}, {pipeline_mode = #tpu.pipeline_mode<synchronous>, transform_indices = @transform_1, window_bounds = array<i64: 8, 128>}]} {
    %c0 = arith.constant 0 : index
    %c0_0 = arith.constant 0 : index
    %0 = vector.load %arg1[%c0, %c0_0] : memref<8x128xf32, #tpu.memory_space<vmem>>, vector<8x128xf32>
    %c0_1 = arith.constant 0 : index
    %c0_2 = arith.constant 0 : index
    %1 = vector.load %arg2[%c0_1, %c0_2] : memref<8x128xf32, #tpu.memory_space<vmem>>, vector<8x128xf32>
    tpu.vector_store %arg2[%c0_1, %c0_2], %0 {strides = array<i32>} : memref<8x128xf32, #tpu.memory_space<vmem>>, vector<8x128xf32>,
    return
  }
  func.func @transform_0(%arg0: i32) -> (i32, i32) {
    %c0_i32 = arith.constant 0 : i32
    %c0_i32_0 = arith.constant 0 : i32
    %c0_i32_1 = arith.constant 0 : i32
    return %c0_i32, %c0_i32_0 : i32, i32
  }
  func.func @transform_1(%arg0: i32) -> (i32, i32) {
    %c0_i32 = arith.constant 0 : i32
    %c0_i32_0 = arith.constant 0 : i32
    %c0_i32_1 = arith.constant 0 : i32
    return %c0_i32, %c0_i32_0 : i32, i32
  }
}

module attributes {stable_mosaic.version = 11 : i64} {
  func.func @transformer_block_kernel(%arg0: i32, %arg1: i32, %arg2: memref<1x8x32xf32, #tpu.memory_space<vmem>>, %arg3: memref<1x32xf32, #tpu.memory_space<vmem>>, %arg4: memref<1x32xf32, #tpu.memory_space<vmem>>, %arg5: memref<1x32xf32, #tpu.memory_space<vmem>>, %arg6: memref<1x32xf32, #tpu.memory_space<vmem>>, %arg7: memref<32x96xbf16, #tpu.memory_space<vmem>>, %arg8: memref<32x32xbf16, #tpu.memory_space<vmem>>, %arg9: memref<1x32xf32, #tpu.memory_space<vmem>>, %arg10: memref<32x128xbf16, #tpu.memory_space<vmem>>, %arg11: memref<1x128xf32, #tpu.memory_space<vmem>>, %arg12: memref<128x32xbf16, #tpu.memory_space<vmem>>, %arg13: memref<1x32xf32, #tpu.memory_space<vmem>>, %arg14: memref<1x8x32xf32, #tpu.memory_space<vmem>>, %arg15: memref<8x96xbf16, #tpu.memory_space<vmem>>, %arg16: memref<8x32xbf16, #tpu.memory_space<vmem>>) attributes {dimension_semantics = [#tpu.dimension_semantics<parallel>, #tpu.dimension_semantics<arbitrary>], iteration_bounds = array<i64: 2, 1>, scalar_prefetch = 0 : i64, scratch_operands = 2 : i64, tpu.core_type = #tpu.core_type<tc>, window_params = [{transform_indices = @transform_0, window_bounds = array<i64: 1, 8, 32>}, {pipeline_mode = #tpu.pipeline_mode<synchronous>, transform_indices = @transform_1, window_bounds = array<i64: 1, 32>}, {pipeline_mode = #tpu.pipeline_mode<synchronous>, transform_indices = @transform_2, window_bounds = array<i64: 1, 32>}, {pipeline_mode = #tpu.pipeline_mode<synchronous>, transform_indices = @transform_3, window_bounds = array<i64: 1, 32>}, {pipeline_mode = #tpu.pipeline_mode<synchronous>, transform_indices = @transform_4, window_bounds = array<i64: 1, 32>}, {pipeline_mode = #tpu.pipeline_mode<synchronous>, transform_indices = @transform_5, window_bounds = array<i64: 32, 96>}, {pipeline_mode = #tpu.pipeline_mode<synchronous>, transform_indices = @transform_6, window_bounds = array<i64: 32, 32>}, {pipeline_mode = #tpu.pipeline_mode<synchronous>, transform_indices = @transform_7, window_bounds = array<i64: 1, 32>}, {pipeline_mode = #tpu.pipeline_mode<synchronous>, transform_indices = @transform_8, window_bounds = array<i64: 32, 128>}, {pipeline_mode = #tpu.pipeline_mode<synchronous>, transform_indices = @transform_9, window_bounds = array<i64: 1, 128>}, {pipeline_mode = #tpu.pipeline_mode<synchronous>, transform_indices = @transform_10, window_bounds = array<i64: 128, 32>}, {pipeline_mode = #tpu.pipeline_mode<synchronous>, transform_indices = @transform_11, window_bounds = array<i64: 1, 32>}, {transform_indices = @transform_12, window_bounds = array<i64: 1, 8, 32>}]} {
    %c8_i32 = arith.constant 8 : i32
    %0 = arith.muli %arg1, %c8_i32 : i32
    %1 = tpu.assume_multiple %0, 8 : i32
    %c0 = arith.constant 0 : index
    %c0_0 = arith.constant 0 : index
    %c0_1 = arith.constant 0 : index
    %2 = vector.load %arg2[%c0, %c0_0, %c0_1] : memref<1x8x32xf32, #tpu.memory_space<vmem>>, vector<1x8x32xf32>
    %3 = vector.shape_cast %2 : vector<1x8x32xf32> to vector<8x32xf32>
    %c0_2 = arith.constant 0 : index
    %c0_3 = arith.constant 0 : index
    %4 = vector.load %arg3[%c0_2, %c0_3] : memref<1x32xf32, #tpu.memory_space<vmem>>, vector<1x32xf32>
    %c0_4 = arith.constant 0 : index
    %c0_5 = arith.constant 0 : index
    %5 = vector.load %arg4[%c0_4, %c0_5] : memref<1x32xf32, #tpu.memory_space<vmem>>, vector<1x32xf32>
    %cst = arith.constant dense<0.000000e+00> : vector<8xf32>
    %6 = vector.multi_reduction <add>, %3, %cst [1] : vector<8x32xf32> to vector<8xf32>
    %7 = vector.shape_cast %6 : vector<8xf32> to vector<8x1xf32>
    %cst_6 = arith.constant 3.200000e+01 : f32
    %8 = vector.broadcast %cst_6 : f32 to vector<8x1xf32>
    %9 = arith.divf %7, %8 : vector<8x1xf32>
    %10 = vector.broadcast %9 : vector<8x1xf32> to vector<8x32xf32>
    %11 = arith.subf %3, %10 : vector<8x32xf32>
    %12 = arith.mulf %11, %11 : vector<8x32xf32>
    %cst_7 = arith.constant dense<0.000000e+00> : vector<8xf32>
    %13 = vector.multi_reduction <add>, %12, %cst_7 [1] : vector<8x32xf32> to vector<8xf32>
    %14 = vector.shape_cast %13 : vector<8xf32> to vector<8x1xf32>
    %cst_8 = arith.constant 3.200000e+01 : f32
    %15 = vector.broadcast %cst_8 : f32 to vector<8x1xf32>
    %16 = arith.divf %14, %15 : vector<8x1xf32>
    %17 = vector.broadcast %9 : vector<8x1xf32> to vector<8x32xf32>
    %18 = arith.subf %3, %17 : vector<8x32xf32>
    %cst_9 = arith.constant 9.99999974E-6 : f32
    %19 = vector.broadcast %cst_9 : f32 to vector<8x1xf32>
    %20 = arith.addf %16, %19 : vector<8x1xf32>
    %21 = math.rsqrt %20 : vector<8x1xf32>
    %22 = vector.broadcast %21 : vector<8x1xf32> to vector<8x32xf32>
    %23 = arith.mulf %18, %22 : vector<8x32xf32>
    %24 = vector.broadcast %4 : vector<1x32xf32> to vector<8x32xf32>
    %25 = arith.mulf %23, %24 : vector<8x32xf32>
    %26 = vector.broadcast %5 : vector<1x32xf32> to vector<8x32xf32>
    %27 = arith.addf %25, %26 : vector<8x32xf32>
    %28 = arith.truncf %27 : vector<8x32xf32> to vector<8x32xbf16>
    %c0_10 = arith.constant 0 : index
    %c0_11 = arith.constant 0 : index
    %29 = vector.load %arg7[%c0_10, %c0_11] : memref<32x96xbf16, #tpu.memory_space<vmem>>, vector<32x96xbf16>
    %cst_12 = arith.constant dense<0.000000e+00> : vector<8x96xf32>
    %30 = tpu.matmul %28, %29, %cst_12 {dimension_numbers = #tpu.dot_dimension_numbers<[1], [0], [0], [1], [0, 0, 1, 1], [], []>} : vector<8x32xbf16>, vector<32x96xbf16>, vector<8x96xf32> -> vector<8x96xf32>
    %31 = arith.truncf %30 : vector<8x96xf32> to vector<8x96xbf16>
    %32 = arith.index_cast %1 : i32 to index
    %c0_13 = arith.constant 0 : index
    %33 = vector.load %arg15[%32, %c0_13] : memref<8x96xbf16, #tpu.memory_space<vmem>>, vector<8x96xbf16>
    tpu.vector_store %arg15[%32, %c0_13], %31 {strides = array<i32>} : memref<8x96xbf16, #tpu.memory_space<vmem>>, vector<8x96xbf16>,
    %34 = tpu.iota {dimensions = array<i32: 0>} : vector<8x8xi32>
    %c8_i32_14 = arith.constant 8 : i32
    %35 = arith.muli %arg1, %c8_i32_14 : i32
    %36 = vector.broadcast %35 : i32 to vector<8x8xi32>
    %37 = arith.addi %34, %36 : vector<8x8xi32>
    %38 = tpu.iota {dimensions = array<i32: 1>} : vector<8x8xi32>
    %39 = vector.extract_strided_slice %30 {offsets = [0, 0], sizes = [8, 8], strides = [1, 1]} : vector<8x96xf32> to vector<8x8xf32>
    %40 = arith.truncf %39 : vector<8x8xf32> to vector<8x8xbf16>
    %cst_15 = arith.constant -1.000000e+30 : f32
    %41 = vector.broadcast %cst_15 : f32 to vector<8x1xf32>
    %cst_16 = arith.constant 0.000000e+00 : f32
    %42 = vector.broadcast %cst_16 : f32 to vector<8x1xf32>
    %cst_17 = arith.constant 0.000000e+00 : f32
    %43 = vector.broadcast %cst_17 : f32 to vector<8x8xf32>
    %c1_i32 = arith.constant 1 : i32
    %44 = arith.addi %arg1, %c1_i32 : i32
    %c0_i32 = arith.constant 0 : i32
    %45 = arith.subi %44, %c0_i32 : i32
    %46 = arith.addi %c0_i32, %45 : i32
    %c1_i32_18 = arith.constant 1 : i32
    %47:3 = scf.for %arg17 = %c0_i32 to %46 step %c1_i32_18 iter_args(%arg18 = %41, %arg19 = %42, %arg20 = %43) -> (vector<8x1xf32>, vector<8x1xf32>, vector<8x8xf32>)  : i32 {
      %c8_i32_74 = arith.constant 8 : i32
      %146 = arith.muli %arg17, %c8_i32_74 : i32
      %147 = tpu.assume_multiple %146, 8 : i32
      %148 = arith.index_cast %147 : i32 to index
      %c32 = arith.constant 32 : index
      %149 = vector.load %arg15[%148, %c32] : memref<8x96xbf16, #tpu.memory_space<vmem>>, vector<8x8xbf16>
      %150 = arith.index_cast %147 : i32 to index
      %c64 = arith.constant 64 : index
      %151 = vector.load %arg15[%150, %c64] : memref<8x96xbf16, #tpu.memory_space<vmem>>, vector<8x8xbf16>
      %cst_75 = arith.constant dense<0.000000e+00> : vector<8x8xf32>
      %152 = tpu.matmul %40, %149, %cst_75 {dimension_numbers = #tpu.dot_dimension_numbers<[1], [1], [0], [0], [0, 0, 1, 0], [], []>} : vector<8x8xbf16>, vector<8x8xbf16>, vector<8x8xf32> -> vector<8x8xf32>
      %153 = vector.broadcast %147 : i32 to vector<8x8xi32>
      %154 = arith.addi %38, %153 : vector<8x8xi32>
      %155 = arith.cmpi sle, %154, %37 : vector<8x8xi32>
      %cst_76 = arith.constant -1.000000e+30 : f32
      %156 = vector.broadcast %cst_76 : f32 to vector<8x8xf32>
      %157 = arith.select %155, %152, %156 : vector<8x8xi1>, vector<8x8xf32>
      %cst_77 = arith.constant dense<0xFF800000> : vector<8xf32>
      %158 = vector.multi_reduction <maximumf>, %157, %cst_77 [1] : vector<8x8xf32> to vector<8xf32>
      %159 = vector.shape_cast %158 : vector<8xf32> to vector<8x1xf32>
      %160 = arith.maximumf %arg18, %159 : vector<8x1xf32>
      %161 = arith.subf %arg18, %160 : vector<8x1xf32>
      %162 = math.exp %161 : vector<8x1xf32>
      %163 = vector.broadcast %160 : vector<8x1xf32> to vector<8x8xf32>
      %164 = arith.subf %157, %163 : vector<8x8xf32>
      %165 = math.exp %164 : vector<8x8xf32>
      %166 = arith.mulf %162, %arg19 : vector<8x1xf32>
      %cst_78 = arith.constant dense<0.000000e+00> : vector<8xf32>
      %167 = vector.multi_reduction <add>, %165, %cst_78 [1] : vector<8x8xf32> to vector<8xf32>
      %168 = vector.shape_cast %167 : vector<8xf32> to vector<8x1xf32>
      %169 = arith.addf %166, %168 : vector<8x1xf32>
      %170 = vector.broadcast %162 : vector<8x1xf32> to vector<8x8xf32>
      %171 = arith.mulf %170, %arg20 : vector<8x8xf32>
      %172 = arith.truncf %165 : vector<8x8xf32> to vector<8x8xbf16>
      %cst_79 = arith.constant dense<0.000000e+00> : vector<8x8xf32>
      %173 = tpu.matmul %172, %151, %cst_79 {dimension_numbers = #tpu.dot_dimension_numbers<[1], [0], [0], [1], [0, 0, 1, 1], [], []>} : vector<8x8xbf16>, vector<8x8xbf16>, vector<8x8xf32> -> vector<8x8xf32>
      %174 = arith.addf %171, %173 : vector<8x8xf32>
      scf.yield %160, %169, %174 : vector<8x1xf32>, vector<8x1xf32>, vector<8x8xf32>
    }
    %48 = vector.broadcast %47#1 : vector<8x1xf32> to vector<8x8xf32>
    %49 = arith.divf %47#2, %48 : vector<8x8xf32>
    %50 = arith.truncf %49 : vector<8x8xf32> to vector<8x8xbf16>
    %c0_19 = arith.constant 0 : index
    %c0_20 = arith.constant 0 : index
    %51 = vector.load %arg16[%c0_19, %c0_20] : memref<8x32xbf16, #tpu.memory_space<vmem>>, vector<8x8xbf16>
    tpu.vector_store %arg16[%c0_19, %c0_20], %50 {strides = array<i32>} : memref<8x32xbf16, #tpu.memory_space<vmem>>, vector<8x8xbf16>,
    %52 = vector.extract_strided_slice %30 {offsets = [0, 8], sizes = [8, 8], strides = [1, 1]} : vector<8x96xf32> to vector<8x8xf32>
    %53 = arith.truncf %52 : vector<8x8xf32> to vector<8x8xbf16>
    %cst_21 = arith.constant -1.000000e+30 : f32
    %54 = vector.broadcast %cst_21 : f32 to vector<8x1xf32>
    %cst_22 = arith.constant 0.000000e+00 : f32
    %55 = vector.broadcast %cst_22 : f32 to vector<8x1xf32>
    %cst_23 = arith.constant 0.000000e+00 : f32
    %56 = vector.broadcast %cst_23 : f32 to vector<8x8xf32>
    %c1_i32_24 = arith.constant 1 : i32
    %57 = arith.addi %arg1, %c1_i32_24 : i32
    %c0_i32_25 = arith.constant 0 : i32
    %58 = arith.subi %57, %c0_i32_25 : i32
    %59 = arith.addi %c0_i32_25, %58 : i32
    %c1_i32_26 = arith.constant 1 : i32
    %60:3 = scf.for %arg17 = %c0_i32_25 to %59 step %c1_i32_26 iter_args(%arg18 = %54, %arg19 = %55, %arg20 = %56) -> (vector<8x1xf32>, vector<8x1xf32>, vector<8x8xf32>)  : i32 {
      %c8_i32_74 = arith.constant 8 : i32
      %146 = arith.muli %arg17, %c8_i32_74 : i32
      %147 = tpu.assume_multiple %146, 8 : i32
      %148 = arith.index_cast %147 : i32 to index
      %c40 = arith.constant 40 : index
      %149 = vector.load %arg15[%148, %c40] : memref<8x96xbf16, #tpu.memory_space<vmem>>, vector<8x8xbf16>
      %150 = arith.index_cast %147 : i32 to index
      %c72 = arith.constant 72 : index
      %151 = vector.load %arg15[%150, %c72] : memref<8x96xbf16, #tpu.memory_space<vmem>>, vector<8x8xbf16>
      %cst_75 = arith.constant dense<0.000000e+00> : vector<8x8xf32>
      %152 = tpu.matmul %53, %149, %cst_75 {dimension_numbers = #tpu.dot_dimension_numbers<[1], [1], [0], [0], [0, 0, 1, 0], [], []>} : vector<8x8xbf16>, vector<8x8xbf16>, vector<8x8xf32> -> vector<8x8xf32>
      %153 = vector.broadcast %147 : i32 to vector<8x8xi32>
      %154 = arith.addi %38, %153 : vector<8x8xi32>
      %155 = arith.cmpi sle, %154, %37 : vector<8x8xi32>
      %cst_76 = arith.constant -1.000000e+30 : f32
      %156 = vector.broadcast %cst_76 : f32 to vector<8x8xf32>
      %157 = arith.select %155, %152, %156 : vector<8x8xi1>, vector<8x8xf32>
      %cst_77 = arith.constant dense<0xFF800000> : vector<8xf32>
      %158 = vector.multi_reduction <maximumf>, %157, %cst_77 [1] : vector<8x8xf32> to vector<8xf32>
      %159 = vector.shape_cast %158 : vector<8xf32> to vector<8x1xf32>
      %160 = arith.maximumf %arg18, %159 : vector<8x1xf32>
      %161 = arith.subf %arg18, %160 : vector<8x1xf32>
      %162 = math.exp %161 : vector<8x1xf32>
      %163 = vector.broadcast %160 : vector<8x1xf32> to vector<8x8xf32>
      %164 = arith.subf %157, %163 : vector<8x8xf32>
      %165 = math.exp %164 : vector<8x8xf32>
      %166 = arith.mulf %162, %arg19 : vector<8x1xf32>
      %cst_78 = arith.constant dense<0.000000e+00> : vector<8xf32>
      %167 = vector.multi_reduction <add>, %165, %cst_78 [1] : vector<8x8xf32> to vector<8xf32>
      %168 = vector.shape_cast %167 : vector<8xf32> to vector<8x1xf32>
      %169 = arith.addf %166, %168 : vector<8x1xf32>
      %170 = vector.broadcast %162 : vector<8x1xf32> to vector<8x8xf32>
      %171 = arith.mulf %170, %arg20 : vector<8x8xf32>
      %172 = arith.truncf %165 : vector<8x8xf32> to vector<8x8xbf16>
      %cst_79 = arith.constant dense<0.000000e+00> : vector<8x8xf32>
      %173 = tpu.matmul %172, %151, %cst_79 {dimension_numbers = #tpu.dot_dimension_numbers<[1], [0], [0], [1], [0, 0, 1, 1], [], []>} : vector<8x8xbf16>, vector<8x8xbf16>, vector<8x8xf32> -> vector<8x8xf32>
      %174 = arith.addf %171, %173 : vector<8x8xf32>
      scf.yield %160, %169, %174 : vector<8x1xf32>, vector<8x1xf32>, vector<8x8xf32>
    }
    %61 = vector.broadcast %60#1 : vector<8x1xf32> to vector<8x8xf32>
    %62 = arith.divf %60#2, %61 : vector<8x8xf32>
    %63 = arith.truncf %62 : vector<8x8xf32> to vector<8x8xbf16>
    %c0_27 = arith.constant 0 : index
    %c8 = arith.constant 8 : index
    %64 = vector.load %arg16[%c0_27, %c8] : memref<8x32xbf16, #tpu.memory_space<vmem>>, vector<8x8xbf16>
    tpu.vector_store %arg16[%c0_27, %c8], %63 {strides = array<i32>} : memref<8x32xbf16, #tpu.memory_space<vmem>>, vector<8x8xbf16>,
    %65 = vector.extract_strided_slice %30 {offsets = [0, 16], sizes = [8, 8], strides = [1, 1]} : vector<8x96xf32> to vector<8x8xf32>
    %66 = arith.truncf %65 : vector<8x8xf32> to vector<8x8xbf16>
    %cst_28 = arith.constant -1.000000e+30 : f32
    %67 = vector.broadcast %cst_28 : f32 to vector<8x1xf32>
    %cst_29 = arith.constant 0.000000e+00 : f32
    %68 = vector.broadcast %cst_29 : f32 to vector<8x1xf32>
    %cst_30 = arith.constant 0.000000e+00 : f32
    %69 = vector.broadcast %cst_30 : f32 to vector<8x8xf32>
    %c1_i32_31 = arith.constant 1 : i32
    %70 = arith.addi %arg1, %c1_i32_31 : i32
    %c0_i32_32 = arith.constant 0 : i32
    %71 = arith.subi %70, %c0_i32_32 : i32
    %72 = arith.addi %c0_i32_32, %71 : i32
    %c1_i32_33 = arith.constant 1 : i32
    %73:3 = scf.for %arg17 = %c0_i32_32 to %72 step %c1_i32_33 iter_args(%arg18 = %67, %arg19 = %68, %arg20 = %69) -> (vector<8x1xf32>, vector<8x1xf32>, vector<8x8xf32>)  : i32 {
      %c8_i32_74 = arith.constant 8 : i32
      %146 = arith.muli %arg17, %c8_i32_74 : i32
      %147 = tpu.assume_multiple %146, 8 : i32
      %148 = arith.index_cast %147 : i32 to index
      %c48 = arith.constant 48 : index
      %149 = vector.load %arg15[%148, %c48] : memref<8x96xbf16, #tpu.memory_space<vmem>>, vector<8x8xbf16>
      %150 = arith.index_cast %147 : i32 to index
      %c80 = arith.constant 80 : index
      %151 = vector.load %arg15[%150, %c80] : memref<8x96xbf16, #tpu.memory_space<vmem>>, vector<8x8xbf16>
      %cst_75 = arith.constant dense<0.000000e+00> : vector<8x8xf32>
      %152 = tpu.matmul %66, %149, %cst_75 {dimension_numbers = #tpu.dot_dimension_numbers<[1], [1], [0], [0], [0, 0, 1, 0], [], []>} : vector<8x8xbf16>, vector<8x8xbf16>, vector<8x8xf32> -> vector<8x8xf32>
      %153 = vector.broadcast %147 : i32 to vector<8x8xi32>
      %154 = arith.addi %38, %153 : vector<8x8xi32>
      %155 = arith.cmpi sle, %154, %37 : vector<8x8xi32>
      %cst_76 = arith.constant -1.000000e+30 : f32
      %156 = vector.broadcast %cst_76 : f32 to vector<8x8xf32>
      %157 = arith.select %155, %152, %156 : vector<8x8xi1>, vector<8x8xf32>
      %cst_77 = arith.constant dense<0xFF800000> : vector<8xf32>
      %158 = vector.multi_reduction <maximumf>, %157, %cst_77 [1] : vector<8x8xf32> to vector<8xf32>
      %159 = vector.shape_cast %158 : vector<8xf32> to vector<8x1xf32>
      %160 = arith.maximumf %arg18, %159 : vector<8x1xf32>
      %161 = arith.subf %arg18, %160 : vector<8x1xf32>
      %162 = math.exp %161 : vector<8x1xf32>
      %163 = vector.broadcast %160 : vector<8x1xf32> to vector<8x8xf32>
      %164 = arith.subf %157, %163 : vector<8x8xf32>
      %165 = math.exp %164 : vector<8x8xf32>
      %166 = arith.mulf %162, %arg19 : vector<8x1xf32>
      %cst_78 = arith.constant dense<0.000000e+00> : vector<8xf32>
      %167 = vector.multi_reduction <add>, %165, %cst_78 [1] : vector<8x8xf32> to vector<8xf32>
      %168 = vector.shape_cast %167 : vector<8xf32> to vector<8x1xf32>
      %169 = arith.addf %166, %168 : vector<8x1xf32>
      %170 = vector.broadcast %162 : vector<8x1xf32> to vector<8x8xf32>
      %171 = arith.mulf %170, %arg20 : vector<8x8xf32>
      %172 = arith.truncf %165 : vector<8x8xf32> to vector<8x8xbf16>
      %cst_79 = arith.constant dense<0.000000e+00> : vector<8x8xf32>
      %173 = tpu.matmul %172, %151, %cst_79 {dimension_numbers = #tpu.dot_dimension_numbers<[1], [0], [0], [1], [0, 0, 1, 1], [], []>} : vector<8x8xbf16>, vector<8x8xbf16>, vector<8x8xf32> -> vector<8x8xf32>
      %174 = arith.addf %171, %173 : vector<8x8xf32>
      scf.yield %160, %169, %174 : vector<8x1xf32>, vector<8x1xf32>, vector<8x8xf32>
    }
    %74 = vector.broadcast %73#1 : vector<8x1xf32> to vector<8x8xf32>
    %75 = arith.divf %73#2, %74 : vector<8x8xf32>
    %76 = arith.truncf %75 : vector<8x8xf32> to vector<8x8xbf16>
    %c0_34 = arith.constant 0 : index
    %c16 = arith.constant 16 : index
    %77 = vector.load %arg16[%c0_34, %c16] : memref<8x32xbf16, #tpu.memory_space<vmem>>, vector<8x8xbf16>
    tpu.vector_store %arg16[%c0_34, %c16], %76 {strides = array<i32>} : memref<8x32xbf16, #tpu.memory_space<vmem>>, vector<8x8xbf16>,
    %78 = vector.extract_strided_slice %30 {offsets = [0, 24], sizes = [8, 8], strides = [1, 1]} : vector<8x96xf32> to vector<8x8xf32>
    %79 = arith.truncf %78 : vector<8x8xf32> to vector<8x8xbf16>
    %cst_35 = arith.constant -1.000000e+30 : f32
    %80 = vector.broadcast %cst_35 : f32 to vector<8x1xf32>
    %cst_36 = arith.constant 0.000000e+00 : f32
    %81 = vector.broadcast %cst_36 : f32 to vector<8x1xf32>
    %cst_37 = arith.constant 0.000000e+00 : f32
    %82 = vector.broadcast %cst_37 : f32 to vector<8x8xf32>
    %c1_i32_38 = arith.constant 1 : i32
    %83 = arith.addi %arg1, %c1_i32_38 : i32
    %c0_i32_39 = arith.constant 0 : i32
    %84 = arith.subi %83, %c0_i32_39 : i32
    %85 = arith.addi %c0_i32_39, %84 : i32
    %c1_i32_40 = arith.constant 1 : i32
    %86:3 = scf.for %arg17 = %c0_i32_39 to %85 step %c1_i32_40 iter_args(%arg18 = %80, %arg19 = %81, %arg20 = %82) -> (vector<8x1xf32>, vector<8x1xf32>, vector<8x8xf32>)  : i32 {
      %c8_i32_74 = arith.constant 8 : i32
      %146 = arith.muli %arg17, %c8_i32_74 : i32
      %147 = tpu.assume_multiple %146, 8 : i32
      %148 = arith.index_cast %147 : i32 to index
      %c56 = arith.constant 56 : index
      %149 = vector.load %arg15[%148, %c56] : memref<8x96xbf16, #tpu.memory_space<vmem>>, vector<8x8xbf16>
      %150 = arith.index_cast %147 : i32 to index
      %c88 = arith.constant 88 : index
      %151 = vector.load %arg15[%150, %c88] : memref<8x96xbf16, #tpu.memory_space<vmem>>, vector<8x8xbf16>
      %cst_75 = arith.constant dense<0.000000e+00> : vector<8x8xf32>
      %152 = tpu.matmul %79, %149, %cst_75 {dimension_numbers = #tpu.dot_dimension_numbers<[1], [1], [0], [0], [0, 0, 1, 0], [], []>} : vector<8x8xbf16>, vector<8x8xbf16>, vector<8x8xf32> -> vector<8x8xf32>
      %153 = vector.broadcast %147 : i32 to vector<8x8xi32>
      %154 = arith.addi %38, %153 : vector<8x8xi32>
      %155 = arith.cmpi sle, %154, %37 : vector<8x8xi32>
      %cst_76 = arith.constant -1.000000e+30 : f32
      %156 = vector.broadcast %cst_76 : f32 to vector<8x8xf32>
      %157 = arith.select %155, %152, %156 : vector<8x8xi1>, vector<8x8xf32>
      %cst_77 = arith.constant dense<0xFF800000> : vector<8xf32>
      %158 = vector.multi_reduction <maximumf>, %157, %cst_77 [1] : vector<8x8xf32> to vector<8xf32>
      %159 = vector.shape_cast %158 : vector<8xf32> to vector<8x1xf32>
      %160 = arith.maximumf %arg18, %159 : vector<8x1xf32>
      %161 = arith.subf %arg18, %160 : vector<8x1xf32>
      %162 = math.exp %161 : vector<8x1xf32>
      %163 = vector.broadcast %160 : vector<8x1xf32> to vector<8x8xf32>
      %164 = arith.subf %157, %163 : vector<8x8xf32>
      %165 = math.exp %164 : vector<8x8xf32>
      %166 = arith.mulf %162, %arg19 : vector<8x1xf32>
      %cst_78 = arith.constant dense<0.000000e+00> : vector<8xf32>
      %167 = vector.multi_reduction <add>, %165, %cst_78 [1] : vector<8x8xf32> to vector<8xf32>
      %168 = vector.shape_cast %167 : vector<8xf32> to vector<8x1xf32>
      %169 = arith.addf %166, %168 : vector<8x1xf32>
      %170 = vector.broadcast %162 : vector<8x1xf32> to vector<8x8xf32>
      %171 = arith.mulf %170, %arg20 : vector<8x8xf32>
      %172 = arith.truncf %165 : vector<8x8xf32> to vector<8x8xbf16>
      %cst_79 = arith.constant dense<0.000000e+00> : vector<8x8xf32>
      %173 = tpu.matmul %172, %151, %cst_79 {dimension_numbers = #tpu.dot_dimension_numbers<[1], [0], [0], [1], [0, 0, 1, 1], [], []>} : vector<8x8xbf16>, vector<8x8xbf16>, vector<8x8xf32> -> vector<8x8xf32>
      %174 = arith.addf %171, %173 : vector<8x8xf32>
      scf.yield %160, %169, %174 : vector<8x1xf32>, vector<8x1xf32>, vector<8x8xf32>
    }
    %87 = vector.broadcast %86#1 : vector<8x1xf32> to vector<8x8xf32>
    %88 = arith.divf %86#2, %87 : vector<8x8xf32>
    %89 = arith.truncf %88 : vector<8x8xf32> to vector<8x8xbf16>
    %c0_41 = arith.constant 0 : index
    %c24 = arith.constant 24 : index
    %90 = vector.load %arg16[%c0_41, %c24] : memref<8x32xbf16, #tpu.memory_space<vmem>>, vector<8x8xbf16>
    tpu.vector_store %arg16[%c0_41, %c24], %89 {strides = array<i32>} : memref<8x32xbf16, #tpu.memory_space<vmem>>, vector<8x8xbf16>,
    %c0_42 = arith.constant 0 : index
    %c0_43 = arith.constant 0 : index
    %91 = vector.load %arg16[%c0_42, %c0_43] : memref<8x32xbf16, #tpu.memory_space<vmem>>, vector<8x32xbf16>
    %c0_44 = arith.constant 0 : index
    %c0_45 = arith.constant 0 : index
    %92 = vector.load %arg8[%c0_44, %c0_45] : memref<32x32xbf16, #tpu.memory_space<vmem>>, vector<32x32xbf16>
    %cst_46 = arith.constant dense<0.000000e+00> : vector<8x32xf32>
    %93 = tpu.matmul %91, %92, %cst_46 {dimension_numbers = #tpu.dot_dimension_numbers<[1], [0], [0], [1], [0, 0, 1, 1], [], []>} : vector<8x32xbf16>, vector<32x32xbf16>, vector<8x32xf32> -> vector<8x32xf32>
    %94 = arith.addf %3, %93 : vector<8x32xf32>
    %c0_47 = arith.constant 0 : index
    %c0_48 = arith.constant 0 : index
    %95 = vector.load %arg9[%c0_47, %c0_48] : memref<1x32xf32, #tpu.memory_space<vmem>>, vector<1x32xf32>
    %96 = vector.broadcast %95 : vector<1x32xf32> to vector<8x32xf32>
    %97 = arith.addf %94, %96 : vector<8x32xf32>
    %c0_49 = arith.constant 0 : index
    %c0_50 = arith.constant 0 : index
    %98 = vector.load %arg5[%c0_49, %c0_50] : memref<1x32xf32, #tpu.memory_space<vmem>>, vector<1x32xf32>
    %c0_51 = arith.constant 0 : index
    %c0_52 = arith.constant 0 : index
    %99 = vector.load %arg6[%c0_51, %c0_52] : memref<1x32xf32, #tpu.memory_space<vmem>>, vector<1x32xf32>
    %cst_53 = arith.constant dense<0.000000e+00> : vector<8xf32>
    %100 = vector.multi_reduction <add>, %97, %cst_53 [1] : vector<8x32xf32> to vector<8xf32>
    %101 = vector.shape_cast %100 : vector<8xf32> to vector<8x1xf32>
    %cst_54 = arith.constant 3.200000e+01 : f32
    %102 = vector.broadcast %cst_54 : f32 to vector<8x1xf32>
    %103 = arith.divf %101, %102 : vector<8x1xf32>
    %104 = vector.broadcast %103 : vector<8x1xf32> to vector<8x32xf32>
    %105 = arith.subf %97, %104 : vector<8x32xf32>
    %106 = arith.mulf %105, %105 : vector<8x32xf32>
    %cst_55 = arith.constant dense<0.000000e+00> : vector<8xf32>
    %107 = vector.multi_reduction <add>, %106, %cst_55 [1] : vector<8x32xf32> to vector<8xf32>
    %108 = vector.shape_cast %107 : vector<8xf32> to vector<8x1xf32>
    %cst_56 = arith.constant 3.200000e+01 : f32
    %109 = vector.broadcast %cst_56 : f32 to vector<8x1xf32>
    %110 = arith.divf %108, %109 : vector<8x1xf32>
    %111 = vector.broadcast %103 : vector<8x1xf32> to vector<8x32xf32>
    %112 = arith.subf %97, %111 : vector<8x32xf32>
    %cst_57 = arith.constant 9.99999974E-6 : f32
    %113 = vector.broadcast %cst_57 : f32 to vector<8x1xf32>
    %114 = arith.addf %110, %113 : vector<8x1xf32>
    %115 = math.rsqrt %114 : vector<8x1xf32>
    %116 = vector.broadcast %115 : vector<8x1xf32> to vector<8x32xf32>
    %117 = arith.mulf %112, %116 : vector<8x32xf32>
    %118 = vector.broadcast %98 : vector<1x32xf32> to vector<8x32xf32>
    %119 = arith.mulf %117, %118 : vector<8x32xf32>
    %120 = vector.broadcast %99 : vector<1x32xf32> to vector<8x32xf32>
    %121 = arith.addf %119, %120 : vector<8x32xf32>
    %122 = arith.truncf %121 : vector<8x32xf32> to vector<8x32xbf16>
    %c0_58 = arith.constant 0 : index
    %c0_59 = arith.constant 0 : index
    %123 = vector.load %arg10[%c0_58, %c0_59] : memref<32x128xbf16, #tpu.memory_space<vmem>>, vector<32x128xbf16>
    %cst_60 = arith.constant dense<0.000000e+00> : vector<8x128xf32>
    %124 = tpu.matmul %122, %123, %cst_60 {dimension_numbers = #tpu.dot_dimension_numbers<[1], [0], [0], [1], [0, 0, 1, 1], [], []>} : vector<8x32xbf16>, vector<32x128xbf16>, vector<8x128xf32> -> vector<8x128xf32>
    %c0_61 = arith.constant 0 : index
    %c0_62 = arith.constant 0 : index
    %125 = vector.load %arg11[%c0_61, %c0_62] : memref<1x128xf32, #tpu.memory_space<vmem>>, vector<1x128xf32>
    %126 = vector.broadcast %125 : vector<1x128xf32> to vector<8x128xf32>
    %127 = arith.addf %124, %126 : vector<8x128xf32>
    %cst_63 = arith.constant 5.000000e-01 : f32
    %128 = vector.broadcast %cst_63 : f32 to vector<8x128xf32>
    %129 = arith.mulf %128, %127 : vector<8x128xf32>
    %cst_64 = arith.constant 0.707106769 : f32
    %130 = vector.broadcast %cst_64 : f32 to vector<8x128xf32>
    %131 = arith.mulf %127, %130 : vector<8x128xf32>
    %132 = math.erf %131 : vector<8x128xf32>
    %cst_65 = arith.constant 1.000000e+00 : f32
    %133 = vector.broadcast %cst_65 : f32 to vector<8x128xf32>
    %134 = arith.addf %133, %132 : vector<8x128xf32>
    %135 = arith.mulf %129, %134 : vector<8x128xf32>
    %136 = arith.truncf %135 : vector<8x128xf32> to vector<8x128xbf16>
    %c0_66 = arith.constant 0 : index
    %c0_67 = arith.constant 0 : index
    %137 = vector.load %arg12[%c0_66, %c0_67] : memref<128x32xbf16, #tpu.memory_space<vmem>>, vector<128x32xbf16>
    %cst_68 = arith.constant dense<0.000000e+00> : vector<8x32xf32>
    %138 = tpu.matmul %136, %137, %cst_68 {dimension_numbers = #tpu.dot_dimension_numbers<[1], [0], [0], [1], [0, 0, 1, 1], [], []>} : vector<8x128xbf16>, vector<128x32xbf16>, vector<8x32xf32> -> vector<8x32xf32>
    %c0_69 = arith.constant 0 : index
    %c0_70 = arith.constant 0 : index
    %139 = vector.load %arg13[%c0_69, %c0_70] : memref<1x32xf32, #tpu.memory_space<vmem>>, vector<1x32xf32>
    %140 = vector.broadcast %139 : vector<1x32xf32> to vector<8x32xf32>
    %141 = arith.addf %138, %140 : vector<8x32xf32>
    %142 = arith.addf %97, %141 : vector<8x32xf32>
    %c0_71 = arith.constant 0 : index
    %c0_72 = arith.constant 0 : index
    %c0_73 = arith.constant 0 : index
    %143 = vector.load %arg14[%c0_71, %c0_72, %c0_73] : memref<1x8x32xf32, #tpu.memory_space<vmem>>, vector<1x8x32xf32>
    %144 = vector.shape_cast %143 : vector<1x8x32xf32> to vector<8x32xf32>
    %145 = vector.shape_cast %142 : vector<8x32xf32> to vector<1x8x32xf32>
    tpu.vector_store %arg14[%c0_71, %c0_72, %c0_73], %145 {strides = array<i32>} : memref<1x8x32xf32, #tpu.memory_space<vmem>>, vector<1x8x32xf32>,
    return
  }
  func.func @transform_0(%arg0: i32, %arg1: i32) -> (i32, i32, i32) {
    %c0_i32 = arith.constant 0 : i32
    %c0_i32_0 = arith.constant 0 : i32
    return %arg0, %arg1, %c0_i32 : i32, i32, i32
  }
  func.func @transform_1(%arg0: i32, %arg1: i32) -> (i32, i32) {
    %c0_i32 = arith.constant 0 : i32
    %c0_i32_0 = arith.constant 0 : i32
    %c0_i32_1 = arith.constant 0 : i32
    return %c0_i32, %c0_i32_0 : i32, i32
  }
  func.func @transform_2(%arg0: i32, %arg1: i32) -> (i32, i32) {
    %c0_i32 = arith.constant 0 : i32
    %c0_i32_0 = arith.constant 0 : i32
    %c0_i32_1 = arith.constant 0 : i32
    return %c0_i32, %c0_i32_0 : i32, i32
  }
  func.func @transform_3(%arg0: i32, %arg1: i32) -> (i32, i32) {
    %c0_i32 = arith.constant 0 : i32
    %c0_i32_0 = arith.constant 0 : i32
    %c0_i32_1 = arith.constant 0 : i32
    return %c0_i32, %c0_i32_0 : i32, i32
  }
  func.func @transform_4(%arg0: i32, %arg1: i32) -> (i32, i32) {
    %c0_i32 = arith.constant 0 : i32
    %c0_i32_0 = arith.constant 0 : i32
    %c0_i32_1 = arith.constant 0 : i32
    return %c0_i32, %c0_i32_0 : i32, i32
  }
  func.func @transform_5(%arg0: i32, %arg1: i32) -> (i32, i32) {
    %c0_i32 = arith.constant 0 : i32
    %c0_i32_0 = arith.constant 0 : i32
    %c0_i32_1 = arith.constant 0 : i32
    return %c0_i32, %c0_i32_0 : i32, i32
  }
  func.func @transform_6(%arg0: i32, %arg1: i32) -> (i32, i32) {
    %c0_i32 = arith.constant 0 : i32
    %c0_i32_0 = arith.constant 0 : i32
    %c0_i32_1 = arith.constant 0 : i32
    return %c0_i32, %c0_i32_0 : i32, i32
  }
  func.func @transform_7(%arg0: i32, %arg1: i32) -> (i32, i32) {
    %c0_i32 = arith.constant 0 : i32
    %c0_i32_0 = arith.constant 0 : i32
    %c0_i32_1 = arith.constant 0 : i32
    return %c0_i32, %c0_i32_0 : i32, i32
  }
  func.func @transform_8(%arg0: i32, %arg1: i32) -> (i32, i32) {
    %c0_i32 = arith.constant 0 : i32
    %c0_i32_0 = arith.constant 0 : i32
    %c0_i32_1 = arith.constant 0 : i32
    return %c0_i32, %c0_i32_0 : i32, i32
  }
  func.func @transform_9(%arg0: i32, %arg1: i32) -> (i32, i32) {
    %c0_i32 = arith.constant 0 : i32
    %c0_i32_0 = arith.constant 0 : i32
    %c0_i32_1 = arith.constant 0 : i32
    return %c0_i32, %c0_i32_0 : i32, i32
  }
  func.func @transform_10(%arg0: i32, %arg1: i32) -> (i32, i32) {
    %c0_i32 = arith.constant 0 : i32
    %c0_i32_0 = arith.constant 0 : i32
    %c0_i32_1 = arith.constant 0 : i32
    return %c0_i32, %c0_i32_0 : i32, i32
  }
  func.func @transform_11(%arg0: i32, %arg1: i32) -> (i32, i32) {
    %c0_i32 = arith.constant 0 : i32
    %c0_i32_0 = arith.constant 0 : i32
    %c0_i32_1 = arith.constant 0 : i32
    return %c0_i32, %c0_i32_0 : i32, i32
  }
  func.func @transform_12(%arg0: i32, %arg1: i32) -> (i32, i32, i32) {
    %c0_i32 = arith.constant 0 : i32
    %c0_i32_0 = arith.constant 0 : i32
    return %arg0, %arg1, %c0_i32 : i32, i32, i32
  }
}

</mosaic_0001>

<llo_original>
// kernel: tpu_custom_call.1
$region0: #{tpu_custom_call.1}
  #allocation0 [shape = 'u32[]', space=smem, size = 0x4, offset = 0x4, fixed_abs, tag = 'smem constant byte address 0x4 - core index']
  #allocation1 [shape = 'u32[144,128]{1,0:T(1,128)}', space=vmem, size = 0x12000, scoped, tag = 'internal scratch']
  %s0 = inlined_call_operand.hbm [shape: f32[8,128], index: 0, kind: input, shape index: {}]
  %s1 = inlined_call_operand.hbm [shape: f32[8,128], index: 1, kind: output, shape index: {}]
  %s2 = sld [smem:[#allocation0]]
  $region41: #{tpu_custom_call.1} parent=0
    _
  %s4 = ssub.s32 1, %s2
  %s5 = scalar_select 0, %s4, %s2
  $region1: #{tpu_custom_call.1} parent=0
    #allocation2 [shape = 'u8[4096]{0}', space=vmem, size = 0x1000, scoped, tag = 'input window, operand 0, single buffered']
    #allocation3 [shape = 's32[2]{0}', space=sflag, size = 0x8, scoped, tag = 'scoped memory for tpu_custom_call.1']
    #allocation4 [shape = 's32[2]{0}', space=sflag, size = 0x8, scoped, tag = 'scoped memory for tpu_custom_call.1']
    #allocation5 [shape = 'u8[4096]{0}', space=vmem, size = 0x1000, scoped, tag = 'output window, operand 0, single buffered']
    %6 = vsyncpa [#allocation3], 0
    %7 = vsyncpa [#allocation4], 0
    loop: start=0, step=1, limit=4
    $region2: #{tpu_custom_call.1} parent=1 // loop_pre_header
      _
    $region3: #{tpu_custom_call.1} parent=1 // loop_header
      %s9 = sphi 0, %s13
      %p10 = scmp.ge.s32.totalorder %s9, 4
      %s17 = sphi 0, %s17
      %s19 = sphi 0, %s17
      %s20 = sphi 0, %s19
      %s34 = sphi 0, %s20
      %s38 = sphi 0, %s38
      %s40 = sphi 0, %s38
      %s41 = sphi 0, %s40
      %s55 = sphi 0, %s41
    $region4: #{tpu_custom_call.1} parent=1 // loop_header_branch
      %12 = sbr.rel (%p10) target = $region8
    $region5: #{tpu_custom_call.1} parent=1 // loop_body
      %s14 = ssub.s32 %s9, 1
      %s15 = ssub.s32 %s9, 2
      %s16 = sadd.s32 %s9, 1
      %s18 = sadd.s32 %s17, 1
      %p21 = scmp.eq.s32.totalorder %s9, 1
      %p22 = scmp.ne.s32.totalorder %s17, %s19
      %p23 = scmp.eq.s32.totalorder %s9, 0
      %p24 = por %p22, %p23
      %p25 = scmp.ne.s32.totalorder %s17, %s19
      %p26 = scmp.eq.s32.totalorder %s14, 1
      %p27 = por %p25, %p26
      %p28 = scmp.ne.s32.totalorder %s19, %s20
      %p29 = scmp.eq.s32.totalorder %s14, 0
      %p30 = por %p28, %p29
      %p31 = scmp.ne.s32.totalorder %s19, %s20
      %p32 = scmp.eq.s32.totalorder %s15, 1
      %p33 = por %p31, %p32
      %p35 = scmp.ne.s32.totalorder %s20, %s34
      %p36 = scmp.eq.s32.totalorder %s15, 0
      %p37 = por %p35, %p36
      %s39 = sadd.s32 %s38, 1
      %p42 = scmp.eq.s32.totalorder %s9, 1
      %p43 = scmp.ne.s32.totalorder %s38, %s40
      %p44 = scmp.eq.s32.totalorder %s9, 0
      %p45 = por %p43, %p44
      %p46 = scmp.ne.s32.totalorder %s38, %s40
      %p47 = scmp.eq.s32.totalorder %s14, 1
      %p48 = por %p46, %p47
      %p49 = scmp.ne.s32.totalorder %s40, %s41
      %p50 = scmp.eq.s32.totalorder %s14, 0
      %p51 = por %p49, %p50
      %p52 = scmp.ne.s32.totalorder %s40, %s41
      %p53 = scmp.eq.s32.totalorder %s15, 1
      %p54 = por %p52, %p53
      %p56 = scmp.ne.s32.totalorder %s41, %s55
      %p57 = scmp.eq.s32.totalorder %s15, 0
      %p58 = por %p56, %p57
      %p59 = scmp.le.s32.totalorder 1, %s9
      %p60 = scmp.lt.s32.totalorder %s9, 3
      %p61 = pnand %p59, %p60
      %p62 = pneg %p61
      // Predicated region
      $region9: #{tpu_custom_call.1} parent=5 // pred_check
        _
      $region10: #{tpu_custom_call.1} parent=5 // pred_check_branch
        %64 = sbr.rel (%p61) target = $region12
      $region11: #{tpu_custom_call.1} parent=5 // pred_region
        %s65 = ssub.s32 %s9, 1
        // Predicated region
        $region13: #{tpu_custom_call.1} parent=11 // pred_check
          %p66 = pneg %p30
        $region14: #{tpu_custom_call.1} parent=11 // pred_check_branch
          %68 = sbr.rel (%p66) target = $region16
        $region15: #{tpu_custom_call.1} parent=11 // pred_region
          %s70 = ssub.s32 128, 128
          %71 = vsyncadd [#allocation3], %s70
          %s73 = sshll.u32 [#allocation2], 4
          %s74 = int_to_ptr.vmem [resolvable:$true] %s73
          %76 = dma.hbm_to_vmem [thread:$0]  %s0, 128, %s74, [#allocation3]
        $region16: #{tpu_custom_call.1} parent=11 // pred_fallthru
          _
      $region12: #{tpu_custom_call.1} parent=5 // pred_fallthru
        _
      %p77 = scmp.lt.s32.totalorder %s9, 2
      // Predicated region
      $region17: #{tpu_custom_call.1} parent=5 // pred_check
        %p78 = pneg %p77
      $region18: #{tpu_custom_call.1} parent=5 // pred_check_branch
        %80 = sbr.rel (%p78) target = $region20
      $region19: #{tpu_custom_call.1} parent=5 // pred_region
        _
      $region20: #{tpu_custom_call.1} parent=5 // pred_fallthru
        _
      %p81 = scmp.le.s32.totalorder 1, %s9
      %p82 = scmp.lt.s32.totalorder %s9, 3
      %p83 = pnand %p81, %p82
      %p84 = pneg %p83
      // Predicated region
      $region21: #{tpu_custom_call.1} parent=5 // pred_check
        _
      $region22: #{tpu_custom_call.1} parent=5 // pred_check_branch
        %86 = sbr.rel (%p83) target = $region24
      $region23: #{tpu_custom_call.1} parent=5 // pred_region
        %s87 = ssub.s32 %s9, 1
        // Predicated region
        $region25: #{tpu_custom_call.1} parent=23 // pred_check
          %p88 = pneg %p30
        $region26: #{tpu_custom_call.1} parent=23 // pred_check_branch
          %90 = sbr.rel (%p88) target = $region28
        $region27: #{tpu_custom_call.1} parent=23 // pred_region
          %91 = dma.done [#allocation3], 128
        $region28: #{tpu_custom_call.1} parent=23 // pred_fallthru
          _
        %p92 = pneg %p30
        %p93 = pneg %p27
        %p94 = pneg %p51
        %p95 = pneg %p48
        %v96 = vld [vmem:[#allocation2] sm:$0xff]
        %97 = vst [vmem:[#allocation5] sm:$0xff] %v96
        // Predicated region
        $region29: #{tpu_custom_call.1} parent=23 // pred_check
          %p98 = pneg %p48
        $region30: #{tpu_custom_call.1} parent=23 // pred_check_branch
          %100 = sbr.rel (%p98) target = $region32
        $region31: #{tpu_custom_call.1} parent=23 // pred_region
          %s102 = ssub.s32 128, 128
          %103 = vsyncadd [#allocation4], %s102
          %s105 = sshll.u32 [#allocation5], 4
          %s106 = int_to_ptr.vmem [resolvable:$true] %s105
          %108 = dma.vmem_to_hbm [thread:$0]  %s106, 128, %s1, [#allocation4]
        $region32: #{tpu_custom_call.1} parent=23 // pred_fallthru
          _
        // Predicated region
        $region33: #{tpu_custom_call.1} parent=23 // pred_check
          %p109 = pneg %p48
        $region34: #{tpu_custom_call.1} parent=23 // pred_check_branch
          %111 = sbr.rel (%p109) target = $region36
        $region35: #{tpu_custom_call.1} parent=23 // pred_region
          %112 = dma.done [#allocation4], 128
        $region36: #{tpu_custom_call.1} parent=23 // pred_fallthru
          _
      $region24: #{tpu_custom_call.1} parent=5 // pred_fallthru
        _
      %p113 = scmp.le.s32.totalorder 2, %s9
      // Predicated region
      $region37: #{tpu_custom_call.1} parent=5 // pred_check
        %p114 = pneg %p113
      $region38: #{tpu_custom_call.1} parent=5 // pred_check_branch
        %116 = sbr.rel (%p114) target = $region40
      $region39: #{tpu_custom_call.1} parent=5 // pred_region
        %s117 = ssub.s32 %s9, 2
      $region40: #{tpu_custom_call.1} parent=5 // pred_fallthru
        _
    $region6: #{tpu_custom_call.1} parent=1 // loop_footer
      %s13 = sadd.s32 1, %s9
    $region7: #{tpu_custom_call.1} parent=1 // loop_footer_branch
      %8 = sbr.rel target = $region3
    $region8: #{tpu_custom_call.1} parent=1 // loop_exit
      _
    %118 = vsyncpa [#allocation3], 1
    %s119 = scalar_lea.sflag [#allocation3], 1
    %120 = vsyncpa %s119, 1
    %121 = vsyncpa [#allocation4], 1
    %s122 = scalar_lea.sflag [#allocation4], 1
    %123 = vsyncpa %s122, 1

// kernel: tpu_custom_call.1
$region0: #{tpu_custom_call.1}
  #allocation0 [shape = 'u32[]', space=smem, size = 0x4, offset = 0x4, fixed_abs, tag = 'smem constant byte address 0x4 - core index']
  #allocation1 [shape = 'u32[144,128]{1,0:T(1,128)}', space=vmem, size = 0x12000, scoped, tag = 'internal scratch']
  #allocation2 [shape = 'bf16[8,96]{1,0:T(8,128)(2,1)}', space=vmem, size = 0x800, scoped, tag = 'scratch operand']
  #allocation3 [shape = 'bf16[8,32]{1,0:T(8,128)(2,1)}', space=vmem, size = 0x800, scoped, tag = 'scratch operand']
  %s0 = inlined_call_operand.vmem [shape: f32[2,8,32], index: 0, kind: input, shape index: {}]
  %s1 = inlined_call_operand.vmem [shape: f32[1,32], index: 1, kind: input, shape index: {}]
  %s2 = inlined_call_operand.vmem [shape: f32[1,32], index: 2, kind: input, shape index: {}]
  %s3 = inlined_call_operand.vmem [shape: f32[1,32], index: 3, kind: input, shape index: {}]
  %s4 = inlined_call_operand.vmem [shape: f32[1,32], index: 4, kind: input, shape index: {}]
  %s5 = inlined_call_operand.vmem [shape: bf16[32,96], index: 5, kind: input, shape index: {}]
  %s6 = inlined_call_operand.vmem [shape: bf16[32,32], index: 6, kind: input, shape index: {}]
  %s7 = inlined_call_operand.vmem [shape: f32[1,32], index: 7, kind: input, shape index: {}]
  %s8 = inlined_call_operand.vmem [shape: bf16[32,128], index: 8, kind: input, shape index: {}]
  %s9 = inlined_call_operand.vmem [shape: f32[1,128], index: 9, kind: input, shape index: {}]
  %s10 = inlined_call_operand.vmem [shape: bf16[128,32], index: 10, kind: input, shape index: {}]
  %s11 = inlined_call_operand.vmem [shape: f32[1,32], index: 11, kind: input, shape index: {}]
  %s12 = inlined_call_operand.hbm [shape: f32[2,8,32], index: 12, kind: output, shape index: {}]
  %s13 = sld [smem:[#allocation0]]
  $region109: #{tpu_custom_call.1} parent=0
    _
  %s15 = ssub.s32 1, %s13
  %s16 = scalar_select 0, %s15, %s13
  $region1: #{tpu_custom_call.1} parent=0
    #allocation4 [shape = 'u8[8192]{0}', space=vmem, size = 0x2000, scoped, tag = 'output window, operand 0']
    #allocation5 [shape = 's32[2]{0}', space=sflag, size = 0x8, scoped, tag = 'scoped memory for tpu_custom_call.1']
    %17 = vsyncpa [#allocation5], 0
    %s18 = scalar_lea.sflag [#allocation5], 1
    %19 = vsyncpa %s18, 0
    loop: start=0, step=1, limit=4
    $region2: #{tpu_custom_call.1} parent=1 // loop_pre_header
      _
    $region3: #{tpu_custom_call.1} parent=1 // loop_header
      %s21 = sphi 0, %s25
      %p22 = scmp.ge.s32.totalorder %s21, 4
      %s28 = sphi 0, %s40
      %s29 = sphi 0, %s36
      %s30 = sphi 0, %s28
      %s31 = sphi 0, %s29
      %s32 = sphi 0, %s30
      %s33 = sphi 0, %s31
      %s45 = sphi 0, %s47
      %s48 = sphi 0, %s45
      %s49 = sphi 0, %s48
      %s65 = sphi 0, %s49
      %s69 = sphi 0, %s69
      %s71 = sphi 0, %s69
      %s72 = sphi 0, %s71
      %s86 = sphi 0, %s72
      %s90 = sphi 0, %s90
      %s92 = sphi 0, %s90
      %s93 = sphi 0, %s92
      %s107 = sphi 0, %s93
      %s111 = sphi 0, %s111
      %s113 = sphi 0, %s111
      %s114 = sphi 0, %s113
      %s128 = sphi 0, %s114
      %s132 = sphi 0, %s132
      %s134 = sphi 0, %s132
      %s135 = sphi 0, %s134
      %s149 = sphi 0, %s135
      %s153 = sphi 0, %s153
      %s155 = sphi 0, %s153
      %s156 = sphi 0, %s155
      %s170 = sphi 0, %s156
      %s174 = sphi 0, %s174
      %s176 = sphi 0, %s174
      %s177 = sphi 0, %s176
      %s191 = sphi 0, %s177
      %s195 = sphi 0, %s195
      %s197 = sphi 0, %s195
      %s198 = sphi 0, %s197
      %s212 = sphi 0, %s198
      %s216 = sphi 0, %s216
      %s218 = sphi 0, %s216
      %s219 = sphi 0, %s218
      %s233 = sphi 0, %s219
      %s237 = sphi 0, %s237
      %s239 = sphi 0, %s237
      %s240 = sphi 0, %s239
      %s254 = sphi 0, %s240
      %s258 = sphi 0, %s258
      %s260 = sphi 0, %s258
      %s261 = sphi 0, %s260
      %s275 = sphi 0, %s261
      %s279 = sphi 0, %s279
      %s281 = sphi 0, %s279
      %s282 = sphi 0, %s281
      %s296 = sphi 0, %s282
      %s304 = sphi 0, %s306
      %s307 = sphi 0, %s304
      %s308 = sphi 0, %s307
      %s324 = sphi 0, %s308
    $region4: #{tpu_custom_call.1} parent=1 // loop_header_branch
      %24 = sbr.rel (%p22) target = $region8
    $region5: #{tpu_custom_call.1} parent=1 // loop_body
      %s26 = ssub.s32 %s21, 1
      %s27 = ssub.s32 %s21, 2
      %s34 = sadd.s32 1, %s29
      %p35 = scmp.ge.s32.totalorder %s34, 1
      %s36 = scalar_select %p35, 0, %s34
      %s37 = sadd.s32 1, %s28
      %s38 = scalar_select %p35, %s37, %s28
      %p39 = scmp.ge.s32.totalorder %s38, 2
      %s40 = scalar_select %p39, 0, %s38
      %s41 = ssub.s32 %s28, %s40
      %s42 = ssub.s32 %s29, %s36
      %s43 = sor.u32 %s41, %s42
      %p44 = scmp.eq.s32.totalorder %s43, 0
      %s46 = sadd.s32 %s45, 1
      %s47 = scalar_select %p44, %s45, %s46
      %p50 = pneg %p44
      %p51 = scmp.eq.s32.totalorder %s21, 1
      %p52 = por %p50, %p51
      %p53 = scmp.ne.s32.totalorder %s45, %s48
      %p54 = scmp.eq.s32.totalorder %s21, 0
      %p55 = por %p53, %p54
      %p56 = scmp.ne.s32.totalorder %s45, %s48
      %p57 = scmp.eq.s32.totalorder %s26, 1
      %p58 = por %p56, %p57
      %p59 = scmp.ne.s32.totalorder %s48, %s49
      %p60 = scmp.eq.s32.totalorder %s26, 0
      %p61 = por %p59, %p60
      %p62 = scmp.ne.s32.totalorder %s48, %s49
      %p63 = scmp.eq.s32.totalorder %s27, 1
      %p64 = por %p62, %p63
      %p66 = scmp.ne.s32.totalorder %s49, %s65
      %p67 = scmp.eq.s32.totalorder %s27, 0
      %p68 = por %p66, %p67
      %s70 = sadd.s32 %s69, 1
      %p73 = scmp.eq.s32.totalorder %s21, 1
      %p74 = scmp.ne.s32.totalorder %s69, %s71
      %p75 = scmp.eq.s32.totalorder %s21, 0
      %p76 = por %p74, %p75
      %p77 = scmp.ne.s32.totalorder %s69, %s71
      %p78 = scmp.eq.s32.totalorder %s26, 1
      %p79 = por %p77, %p78
      %p80 = scmp.ne.s32.totalorder %s71, %s72
      %p81 = scmp.eq.s32.totalorder %s26, 0
      %p82 = por %p80, %p81
      %p83 = scmp.ne.s32.totalorder %s71, %s72
      %p84 = scmp.eq.s32.totalorder %s27, 1
      %p85 = por %p83, %p84
      %p87 = scmp.ne.s32.totalorder %s72, %s86
      %p88 = scmp.eq.s32.totalorder %s27, 0
      %p89 = por %p87, %p88
      %s91 = sadd.s32 %s90, 1
      %p94 = scmp.eq.s32.totalorder %s21, 1
      %p95 = scmp.ne.s32.totalorder %s90, %s92
      %p96 = scmp.eq.s32.totalorder %s21, 0
      %p97 = por %p95, %p96
      %p98 = scmp.ne.s32.totalorder %s90, %s92
      %p99 = scmp.eq.s32.totalorder %s26, 1
      %p100 = por %p98, %p99
      %p101 = scmp.ne.s32.totalorder %s92, %s93
      %p102 = scmp.eq.s32.totalorder %s26, 0
      %p103 = por %p101, %p102
      %p104 = scmp.ne.s32.totalorder %s92, %s93
      %p105 = scmp.eq.s32.totalorder %s27, 1
      %p106 = por %p104, %p105
      %p108 = scmp.ne.s32.totalorder %s93, %s107
      %p109 = scmp.eq.s32.totalorder %s27, 0
      %p110 = por %p108, %p109
      %s112 = sadd.s32 %s111, 1
      %p115 = scmp.eq.s32.totalorder %s21, 1
      %p116 = scmp.ne.s32.totalorder %s111, %s113
      %p117 = scmp.eq.s32.totalorder %s21, 0
      %p118 = por %p116, %p117
      %p119 = scmp.ne.s32.totalorder %s111, %s113
      %p120 = scmp.eq.s32.totalorder %s26, 1
      %p121 = por %p119, %p120
      %p122 = scmp.ne.s32.totalorder %s113, %s114
      %p123 = scmp.eq.s32.totalorder %s26, 0
      %p124 = por %p122, %p123
      %p125 = scmp.ne.s32.totalorder %s113, %s114
      %p126 = scmp.eq.s32.totalorder %s27, 1
      %p127 = por %p125, %p126
      %p129 = scmp.ne.s32.totalorder %s114, %s128
      %p130 = scmp.eq.s32.totalorder %s27, 0
      %p131 = por %p129, %p130
      %s133 = sadd.s32 %s132, 1
      %p136 = scmp.eq.s32.totalorder %s21, 1
      %p137 = scmp.ne.s32.totalorder %s132, %s134
      %p138 = scmp.eq.s32.totalorder %s21, 0
      %p139 = por %p137, %p138
      %p140 = scmp.ne.s32.totalorder %s132, %s134
      %p141 = scmp.eq.s32.totalorder %s26, 1
      %p142 = por %p140, %p141
      %p143 = scmp.ne.s32.totalorder %s134, %s135
      %p144 = scmp.eq.s32.totalorder %s26, 0
      %p145 = por %p143, %p144
      %p146 = scmp.ne.s32.totalorder %s134, %s135
      %p147 = scmp.eq.s32.totalorder %s27, 1
      %p148 = por %p146, %p147
      %p150 = scmp.ne.s32.totalorder %s135, %s149
      %p151 = scmp.eq.s32.totalorder %s27, 0
      %p152 = por %p150, %p151
      %s154 = sadd.s32 %s153, 1
      %p157 = scmp.eq.s32.totalorder %s21, 1
      %p158 = scmp.ne.s32.totalorder %s153, %s155
      %p159 = scmp.eq.s32.totalorder %s21, 0
      %p160 = por %p158, %p159
      %p161 = scmp.ne.s32.totalorder %s153, %s155
      %p162 = scmp.eq.s32.totalorder %s26, 1
      %p163 = por %p161, %p162
      %p164 = scmp.ne.s32.totalorder %s155, %s156
      %p165 = scmp.eq.s32.totalorder %s26, 0
      %p166 = por %p164, %p165
      %p167 = scmp.ne.s32.totalorder %s155, %s156
      %p168 = scmp.eq.s32.totalorder %s27, 1
      %p169 = por %p167, %p168
      %p171 = scmp.ne.s32.totalorder %s156, %s170
      %p172 = scmp.eq.s32.totalorder %s27, 0
      %p173 = por %p171, %p172
      %s175 = sadd.s32 %s174, 1
      %p178 = scmp.eq.s32.totalorder %s21, 1
      %p179 = scmp.ne.s32.totalorder %s174, %s176
      %p180 = scmp.eq.s32.totalorder %s21, 0
      %p181 = por %p179, %p180
      %p182 = scmp.ne.s32.totalorder %s174, %s176
      %p183 = scmp.eq.s32.totalorder %s26, 1
      %p184 = por %p182, %p183
      %p185 = scmp.ne.s32.totalorder %s176, %s177
      %p186 = scmp.eq.s32.totalorder %s26, 0
      %p187 = por %p185, %p186
      %p188 = scmp.ne.s32.totalorder %s176, %s177
      %p189 = scmp.eq.s32.totalorder %s27, 1
      %p190 = por %p188, %p189
      %p192 = scmp.ne.s32.totalorder %s177, %s191
      %p193 = scmp.eq.s32.totalorder %s27, 0
      %p194 = por %p192, %p193
      %s196 = sadd.s32 %s195, 1
      %p199 = scmp.eq.s32.totalorder %s21, 1
      %p200 = scmp.ne.s32.totalorder %s195, %s197
      %p201 = scmp.eq.s32.totalorder %s21, 0
      %p202 = por %p200, %p201
      %p203 = scmp.ne.s32.totalorder %s195, %s197
      %p204 = scmp.eq.s32.totalorder %s26, 1
      %p205 = por %p203, %p204
      %p206 = scmp.ne.s32.totalorder %s197, %s198
      %p207 = scmp.eq.s32.totalorder %s26, 0
      %p208 = por %p206, %p207
      %p209 = scmp.ne.s32.totalorder %s197, %s198
      %p210 = scmp.eq.s32.totalorder %s27, 1
      %p211 = por %p209, %p210
      %p213 = scmp.ne.s32.totalorder %s198, %s212
      %p214 = scmp.eq.s32.totalorder %s27, 0
      %p215 = por %p213, %p214
      %s217 = sadd.s32 %s216, 1
      %p220 = scmp.eq.s32.totalorder %s21, 1
      %p221 = scmp.ne.s32.totalorder %s216, %s218
      %p222 = scmp.eq.s32.totalorder %s21, 0
      %p223 = por %p221, %p222
      %p224 = scmp.ne.s32.totalorder %s216, %s218
      %p225 = scmp.eq.s32.totalorder %s26, 1
      %p226 = por %p224, %p225
      %p227 = scmp.ne.s32.totalorder %s218, %s219
      %p228 = scmp.eq.s32.totalorder %s26, 0
      %p229 = por %p227, %p228
      %p230 = scmp.ne.s32.totalorder %s218, %s219
      %p231 = scmp.eq.s32.totalorder %s27, 1
      %p232 = por %p230, %p231
      %p234 = scmp.ne.s32.totalorder %s219, %s233
      %p235 = scmp.eq.s32.totalorder %s27, 0
      %p236 = por %p234, %p235
      %s238 = sadd.s32 %s237, 1
      %p241 = scmp.eq.s32.totalorder %s21, 1
      %p242 = scmp.ne.s32.totalorder %s237, %s239
      %p243 = scmp.eq.s32.totalorder %s21, 0
      %p244 = por %p242, %p243
      %p245 = scmp.ne.s32.totalorder %s237, %s239
      %p246 = scmp.eq.s32.totalorder %s26, 1
      %p247 = por %p245, %p246
      %p248 = scmp.ne.s32.totalorder %s239, %s240
      %p249 = scmp.eq.s32.totalorder %s26, 0
      %p250 = por %p248, %p249
      %p251 = scmp.ne.s32.totalorder %s239, %s240
      %p252 = scmp.eq.s32.totalorder %s27, 1
      %p253 = por %p251, %p252
      %p255 = scmp.ne.s32.totalorder %s240, %s254
      %p256 = scmp.eq.s32.totalorder %s27, 0
      %p257 = por %p255, %p256
      %s259 = sadd.s32 %s258, 1
      %p262 = scmp.eq.s32.totalorder %s21, 1
      %p263 = scmp.ne.s32.totalorder %s258, %s260
      %p264 = scmp.eq.s32.totalorder %s21, 0
      %p265 = por %p263, %p264
      %p266 = scmp.ne.s32.totalorder %s258, %s260
      %p267 = scmp.eq.s32.totalorder %s26, 1
      %p268 = por %p266, %p267
      %p269 = scmp.ne.s32.totalorder %s260, %s261
      %p270 = scmp.eq.s32.totalorder %s26, 0
      %p271 = por %p269, %p270
      %p272 = scmp.ne.s32.totalorder %s260, %s261
      %p273 = scmp.eq.s32.totalorder %s27, 1
      %p274 = por %p272, %p273
      %p276 = scmp.ne.s32.totalorder %s261, %s275
      %p277 = scmp.eq.s32.totalorder %s27, 0
      %p278 = por %p276, %p277
      %s280 = sadd.s32 %s279, 1
      %p283 = scmp.eq.s32.totalorder %s21, 1
      %p284 = scmp.ne.s32.totalorder %s279, %s281
      %p285 = scmp.eq.s32.totalorder %s21, 0
      %p286 = por %p284, %p285
      %p287 = scmp.ne.s32.totalorder %s279, %s281
      %p288 = scmp.eq.s32.totalorder %s26, 1
      %p289 = por %p287, %p288
      %p290 = scmp.ne.s32.totalorder %s281, %s282
      %p291 = scmp.eq.s32.totalorder %s26, 0
      %p292 = por %p290, %p291
      %p293 = scmp.ne.s32.totalorder %s281, %s282
      %p294 = scmp.eq.s32.totalorder %s27, 1
      %p295 = por %p293, %p294
      %p297 = scmp.ne.s32.totalorder %s282, %s296
      %p298 = scmp.eq.s32.totalorder %s27, 0
      %p299 = por %p297, %p298
      %s300 = ssub.s32 %s28, %s40
      %s301 = ssub.s32 %s29, %s36
      %s302 = sor.u32 %s300, %s301
      %p303 = scmp.eq.s32.totalorder %s302, 0
      %s305 = sadd.s32 %s304, 1
      %s306 = scalar_select %p303, %s304, %s305
      %p309 = pneg %p303
      %p310 = scmp.eq.s32.totalorder %s21, 1
      %p311 = por %p309, %p310
      %p312 = scmp.ne.s32.totalorder %s304, %s307
      %p313 = scmp.eq.s32.totalorder %s21, 0
      %p314 = por %p312, %p313
      %p315 = scmp.ne.s32.totalorder %s304, %s307
      %p316 = scmp.eq.s32.totalorder %s26, 1
      %p317 = por %p315, %p316
      %p318 = scmp.ne.s32.totalorder %s307, %s308
      %p319 = scmp.eq.s32.totalorder %s26, 0
      %p320 = por %p318, %p319
      %p321 = scmp.ne.s32.totalorder %s307, %s308
      %p322 = scmp.eq.s32.totalorder %s27, 1
      %p323 = por %p321, %p322
      %p325 = scmp.ne.s32.totalorder %s308, %s324
      %p326 = scmp.eq.s32.totalorder %s27, 0
      %p327 = por %p325, %p326
      %p328 = scmp.le.s32.totalorder 1, %s21
      %p329 = scmp.lt.s32.totalorder %s21, 3
      %p330 = pnand %p328, %p329
      %p331 = pneg %p330
      // Predicated region
      $region9: #{tpu_custom_call.1} parent=5 // pred_check
        _
      $region10: #{tpu_custom_call.1} parent=5 // pred_check_branch
        %333 = sbr.rel (%p330) target = $region12
      $region11: #{tpu_custom_call.1} parent=5 // pred_region
        %s334 = ssub.s32 %s21, 1
        // Predicated region
        $region13: #{tpu_custom_call.1} parent=11 // pred_check
          %p335 = pneg %p82
        $region14: #{tpu_custom_call.1} parent=11 // pred_check_branch
          %337 = sbr.rel (%p335) target = $region16
        $region15: #{tpu_custom_call.1} parent=11 // pred_region
          _
        $region16: #{tpu_custom_call.1} parent=11 // pred_fallthru
          _
        // Predicated region
        $region17: #{tpu_custom_call.1} parent=11 // pred_check
          %p338 = pneg %p103
        $region18: #{tpu_custom_call.1} parent=11 // pred_check_branch
          %340 = sbr.rel (%p338) target = $region20
        $region19: #{tpu_custom_call.1} parent=11 // pred_region
          _
        $region20: #{tpu_custom_call.1} parent=11 // pred_fallthru
          _
        // Predicated region
        $region21: #{tpu_custom_call.1} parent=11 // pred_check
          %p341 = pneg %p124
        $region22: #{tpu_custom_call.1} parent=11 // pred_check_branch
          %343 = sbr.rel (%p341) target = $region24
        $region23: #{tpu_custom_call.1} parent=11 // pred_region
          _
        $region24: #{tpu_custom_call.1} parent=11 // pred_fallthru
          _
        // Predicated region
        $region25: #{tpu_custom_call.1} parent=11 // pred_check
          %p344 = pneg %p145
        $region26: #{tpu_custom_call.1} parent=11 // pred_check_branch
          %346 = sbr.rel (%p344) target = $region28
        $region27: #{tpu_custom_call.1} parent=11 // pred_region
          _
        $region28: #{tpu_custom_call.1} parent=11 // pred_fallthru
          _
        // Predicated region
        $region29: #{tpu_custom_call.1} parent=11 // pred_check
          %p347 = pneg %p166
        $region30: #{tpu_custom_call.1} parent=11 // pred_check_branch
          %349 = sbr.rel (%p347) target = $region32
        $region31: #{tpu_custom_call.1} parent=11 // pred_region
          _
        $region32: #{tpu_custom_call.1} parent=11 // pred_fallthru
          _
        // Predicated region
        $region33: #{tpu_custom_call.1} parent=11 // pred_check
          %p350 = pneg %p187
        $region34: #{tpu_custom_call.1} parent=11 // pred_check_branch
          %352 = sbr.rel (%p350) target = $region36
        $region35: #{tpu_custom_call.1} parent=11 // pred_region
          _
        $region36: #{tpu_custom_call.1} parent=11 // pred_fallthru
          _
        // Predicated region
        $region37: #{tpu_custom_call.1} parent=11 // pred_check
          %p353 = pneg %p208
        $region38: #{tpu_custom_call.1} parent=11 // pred_check_branch
          %355 = sbr.rel (%p353) target = $region40
        $region39: #{tpu_custom_call.1} parent=11 // pred_region
          _
        $region40: #{tpu_custom_call.1} parent=11 // pred_fallthru
          _
        // Predicated region
        $region41: #{tpu_custom_call.1} parent=11 // pred_check
          %p356 = pneg %p229
        $region42: #{tpu_custom_call.1} parent=11 // pred_check_branch
          %358 = sbr.rel (%p356) target = $region44
        $region43: #{tpu_custom_call.1} parent=11 // pred_region
          _
        $region44: #{tpu_custom_call.1} parent=11 // pred_fallthru
          _
        // Predicated region
        $region45: #{tpu_custom_call.1} parent=11 // pred_check
          %p359 = pneg %p250
        $region46: #{tpu_custom_call.1} parent=11 // pred_check_branch
          %361 = sbr.rel (%p359) target = $region48
        $region47: #{tpu_custom_call.1} parent=11 // pred_region
          _
        $region48: #{tpu_custom_call.1} parent=11 // pred_fallthru
          _
        // Predicated region
        $region49: #{tpu_custom_call.1} parent=11 // pred_check
          %p362 = pneg %p271
        $region50: #{tpu_custom_call.1} parent=11 // pred_check_branch
          %364 = sbr.rel (%p362) target = $region52
        $region51: #{tpu_custom_call.1} parent=11 // pred_region
          _
        $region52: #{tpu_custom_call.1} parent=11 // pred_fallthru
          _
        // Predicated region
        $region53: #{tpu_custom_call.1} parent=11 // pred_check
          %p365 = pneg %p292
        $region54: #{tpu_custom_call.1} parent=11 // pred_check_branch
          %367 = sbr.rel (%p365) target = $region56
        $region55: #{tpu_custom_call.1} parent=11 // pred_region
          _
        $region56: #{tpu_custom_call.1} parent=11 // pred_fallthru
          _
      $region12: #{tpu_custom_call.1} parent=5 // pred_fallthru
        _
      %p368 = scmp.lt.s32.totalorder %s21, 2
      // Predicated region
      $region57: #{tpu_custom_call.1} parent=5 // pred_check
        %p369 = pneg %p368
      $region58: #{tpu_custom_call.1} parent=5 // pred_check_branch
        %371 = sbr.rel (%p369) target = $region60
      $region59: #{tpu_custom_call.1} parent=5 // pred_region
        // Predicated region
        $region61: #{tpu_custom_call.1} parent=59 // pred_check
          %p372 = pneg %p55
        $region62: #{tpu_custom_call.1} parent=59 // pred_check_branch
          %374 = sbr.rel (%p372) target = $region64
        $region63: #{tpu_custom_call.1} parent=59 // pred_region
          %p375 = scmp.lt.s32.totalorder %s28, 1
          %s376 = scalar_select %p375, %s28, 1
          %p377 = scmp.lt.s32.totalorder %s29, 0
          %s378 = scalar_select %p377, %s29, 0
          %s379 = sadd.s32 %s378, %s376
          %s380 = smul.addr %s379, 8
          %s381 = scalar_lea.vmem %s0, %s380
        $region64: #{tpu_custom_call.1} parent=59 // pred_fallthru
          _
      $region60: #{tpu_custom_call.1} parent=5 // pred_fallthru
        _
      %p382 = scmp.le.s32.totalorder 1, %s21
      %p383 = scmp.lt.s32.totalorder %s21, 3
      %p384 = pnand %p382, %p383
      %p385 = pneg %p384
      // Predicated region
      $region65: #{tpu_custom_call.1} parent=5 // pred_check
        _
      $region66: #{tpu_custom_call.1} parent=5 // pred_check_branch
        %387 = sbr.rel (%p384) target = $region68
      $region67: #{tpu_custom_call.1} parent=5 // pred_region
        %s388 = ssub.s32 %s21, 1
        %p389 = scmp.lt.s32.totalorder %s30, 1
        %s390 = scalar_select %p389, %s30, 1
        %p391 = scmp.lt.s32.totalorder %s31, 0
        %s392 = scalar_select %p391, %s31, 0
        %s393 = sadd.s32 %s392, %s390
        %s394 = smul.addr %s393, 8
        %s395 = scalar_lea.vmem %s0, %s394
        %p396 = pneg %p61
        %p397 = pneg %p58
        %p398 = pneg %p82
        %p399 = pneg %p79
        %p400 = pneg %p103
        %p401 = pneg %p100
        %p402 = pneg %p124
        %p403 = pneg %p121
        %p404 = pneg %p145
        %p405 = pneg %p142
        %p406 = pneg %p166
        %p407 = pneg %p163
        %p408 = pneg %p187
        %p409 = pneg %p184
        %p410 = pneg %p208
        %p411 = pneg %p205
        %p412 = pneg %p229
        %p413 = pneg %p226
        %p414 = pneg %p250
        %p415 = pneg %p247
        %p416 = pneg %p271
        %p417 = pneg %p268
        %p418 = pneg %p292
        %p419 = pneg %p289
        %p420 = pneg %p320
        %p421 = pneg %p317
        %s422 = sand.u32 %s307, 1
        %s423 = scalar_lea.sflag [#allocation5], %s422
        %s424 = sand.u32 %s307, 1
        %s425 = smul.addr %s424, 8
        %s426 = scalar_lea.vmem [#allocation4], %s425
        %p427 = scmp.lt.s32.totalorder %s30, 1
        %s428 = scalar_select %p427, %s30, 1
        %p429 = scmp.lt.s32.totalorder %s31, 0
        %s430 = scalar_select %p429, %s31, 0
        %s431 = sadd.s32 %s430, %s428
        %s432 = smul.addr %s431, 8
        %s433 = scalar_lea.vmem %s0, %s432
        %s435 = smul.u32 %s31, 8
        %v436 = vld [vmem:[%s433] sm:$0xff]
        %v437 = vld [vmem:[%s1] sm:$0x1]
        %v438 = vld [vmem:[%s2] sm:$0x1]
        %vm439 = vcmask 261120
        %v440 = vsel %vm439, %v436, 0.0
        %441 = vadd.xlane.f32.xlu0 %v440
        %v442 = vpop.xlane.xlu0 %441
        %v443 = vrcp.pop 32.0
        %v444 = vmul.f32 %v442, %v443
        %v445 = vsub.f32 %v436, %v444
        %v446 = vmul.f32 %v445, %v445
        %v447 = vsel %vm439, %v446, 0.0
        %448 = vadd.xlane.f32.xlu0 %v447
        %v449 = vpop.xlane.xlu0 %448
        %v450 = vmul.f32 %v449, %v443
        %v451 = vadd.f32 %v450, 1e-05
        %v452 = vrsqrt.pop %v451
        %v453 = vmul.f32 %v445, %v452
        %v455 = vlaneseq
        %v456 = vshrl.u32 %v455, 7
        %v457 = vsub.s32 0, %v456
        %v458 = vrot.slane %v437, %v457
        %v460 = vmul.f32 %v453, %v458
        %v462 = vlaneseq
        %v463 = vshrl.u32 %v462, 7
        %v464 = vsub.s32 0, %v463
        %v465 = vrot.slane %v438, %v464
        %v467 = vadd.f32 %v460, %v465
        %v468 = vpack.c.bf16 %v467, %v467
        %v469 = vld [vmem:[%s5] sm:$0xf]
        %v470 = vld [vmem:[%s5 + $0x4] sm:$0xf]
        %v471 = vld [vmem:[%s5 + $0x8] sm:$0xf]
        %v472 = vld [vmem:[%s5 + $0xc] sm:$0xf]
        %v477 = vunpack.c.l.b16 %v469
        %v478 = vunpack.c.l.b16 %v470
        %v479 = vunpack.c.l.b16 %v471
        %v480 = vunpack.c.l.b16 %v472
        %v481 = vpack.c.b16 %v478, %v477
        %v482 = vpack.c.b16 %v480, %v479
        %v486 = vsel %vm439, %v468, 0
        %488 = vmatprep.subr.bf16.mxu0 0
        %489 = vmatpush1.bf16.msra.mxu0 0
        %490 = vmatprep.subr.bf16.mxu0 0
        %491 = vmatpush1.bf16.msra.mxu0 0
        %492 = vmatprep.subr.bf16.mxu0 0
        %493 = vmatpush1.bf16.msra.mxu0 0
        %494 = vmatprep.subr.bf16.mxu0 0
        %495 = vmatpush1.bf16.msra.mxu0 0
        %496 = vmatprep.subr.bf16.mxu0 0
        %497 = vmatpush1.bf16.msra.mxu0 0
        %498 = vmatprep.subr.bf16.mxu0 0
        %499 = vmatpush1.bf16.msra.mxu0 0
        %500 = vmatprep.subr.bf16.mxu0 0
        %501 = vmatpush1.bf16.msra.mxu0 %v482
        %502 = vmatprep.subr.bf16.mxu0 0
        %503 = vmatpush1.bf16.msra.mxu0 %v481
        %504 = vmatprep.subr.bf16.mxu0 0
        %505 = vmatpush2.bf16.msra.mxu0 0
        %506 = vmatprep.subr.bf16.mxu0 0
        %507 = vmatpush2.bf16.msra.mxu0 0
        %508 = vmatprep.subr.bf16.mxu0 0
        %509 = vmatpush2.bf16.msra.mxu0 0
        %510 = vmatprep.subr.bf16.mxu0 0
        %511 = vmatpush2.bf16.msra.mxu0 0
        %512 = vmatprep.subr.bf16.mxu0 0
        %513 = vmatpush2.bf16.msra.mxu0 0
        %514 = vmatprep.subr.bf16.mxu0 0
        %515 = vmatpush2.bf16.msra.mxu0 0
        %516 = vmatprep.subr.bf16.mxu0 0
        %517 = vmatpush2.bf16.msra.mxu0 0
        %518 = vmatprep.subr.bf16.mxu0 0
        %519 = vmatpush2.bf16.msra.mxu0 0
        %520 = vmatprep.mubr.bf16.mxu0 0
        %521 = vmatmul.mubr.bf16.gmra.mxu0 %v486
        %v522 = vpop.f32.mrf.mxu0
        %v523 = vadd.f32 0.0, %v522
        %v524 = vpop.f32.mrf.mxu0
        %v525 = vpop.f32.mrf.mxu0
        %v526 = vpop.f32.mrf.mxu0
        %527 = vdwg.mxu0
        %v528 = vpack.c.bf16 %v523, %v523
        %s529 = sshra.s32 %s435, 3
        %s530 = sand.u32 %s435, 7
        %s531 = smul.addr %s529, 4
        %s532 = scalar_lea.vmem [#allocation2], %s531
        %vm533 = vcmask 781312
        %534 = vst.msk [vmem:[%s532] sm:$0xf] %vm533, %v528
        %v535 = vlaneseq
        %v536 = vshrl.u32 %v535, 7
        %v537 = vstv %s435
        %v538 = vadd.s32 %v536, %v537
        %v539 = vlaneseq
        %v540 = vand.u32 %v539, 127
        %s541 = sadd.s32 %s31, 1
        // While loop
        $region69: #{tpu_custom_call.1} parent=67 // loop_pre_header
          _
        $region70: #{tpu_custom_call.1} parent=67 // loop_header
          %s543 = sphi 0, %s545
          %p544 = scmp.ge.s32.totalorder %s543, %s541
          %v548 = vphi -1e+30, %v616
          %v549 = vphi 0.0, %v627
          %v550 = vphi 0.0, %v679
        $region71: #{tpu_custom_call.1} parent=67 // loop_header_branch
          %547 = sbr.rel (%p544) target = $region75
        $region72: #{tpu_custom_call.1} parent=67 // loop_body
          %s551 = smul.u32 %s543, 8
          %s552 = sshra.s32 %s551, 3
          %s553 = sand.u32 %s551, 7
          %s554 = smul.addr %s552, 4
          %s555 = scalar_lea.vmem [#allocation2], %s554
          %v556 = vld [vmem:[%s555] sm:$0xf]
          %v558 = vunpack.c.l.b16 %v556
          %v559 = vpack.c.b16 %v558, %v558
          %560 = vrot.lane.b32.xlu0 %v559, 96
          %v561 = vpop.permute.xlu0 %560
          %vm562 = vcmask 64512
          %v564 = vsel %vm562, %v528, 0
          %v567 = vsel %vm562, %v561, 0
          %569 = vmatprep.subr.bf16.mxu0 0
          %570 = vmatpush1.bf16.xpose.msra.mxu0 0
          %571 = vmatprep.subr.bf16.mxu0 0
          %572 = vmatpush1.bf16.xpose.msra.mxu0 0
          %573 = vmatprep.subr.bf16.mxu0 0
          %574 = vmatpush1.bf16.xpose.msra.mxu0 0
          %575 = vmatprep.subr.bf16.mxu0 0
          %576 = vmatpush1.bf16.xpose.msra.mxu0 0
          %577 = vmatprep.subr.bf16.mxu0 0
          %578 = vmatpush1.bf16.xpose.msra.mxu0 0
          %579 = vmatprep.subr.bf16.mxu0 0
          %580 = vmatpush1.bf16.xpose.msra.mxu0 0
          %581 = vmatprep.subr.bf16.mxu0 0
          %582 = vmatpush1.bf16.xpose.msra.mxu0 0
          %583 = vmatprep.subr.bf16.mxu0 0
          %584 = vmatpush1.bf16.xpose.msra.mxu0 %v567
          %585 = vmatprep.subr.bf16.mxu0 0
          %586 = vmatpush2.bf16.xpose.msra.mxu0 0
          %587 = vmatprep.subr.bf16.mxu0 0
          %588 = vmatpush2.bf16.xpose.msra.mxu0 0
          %589 = vmatprep.subr.bf16.mxu0 0
          %590 = vmatpush2.bf16.xpose.msra.mxu0 0
          %591 = vmatprep.subr.bf16.mxu0 0
          %592 = vmatpush2.bf16.xpose.msra.mxu0 0
          %593 = vmatprep.subr.bf16.mxu0 0
          %594 = vmatpush2.bf16.xpose.msra.mxu0 0
          %595 = vmatprep.subr.bf16.mxu0 0
          %596 = vmatpush2.bf16.xpose.msra.mxu0 0
          %597 = vmatprep.subr.bf16.mxu0 0
          %598 = vmatpush2.bf16.xpose.msra.mxu0 0
          %599 = vmatprep.subr.bf16.mxu0 0
          %600 = vmatpush2.bf16.xpose.msra.mxu0 0
          %601 = vmatprep.mubr.bf16.mxu0 0
          %602 = vmatmul.mubr.bf16.gmra.mxu0 %v564
          %v603 = vpop.f32.mrf.mxu0
          %v604 = vadd.f32 0.0, %v603
          %v605 = vpop.f32.mrf.mxu0
          %v606 = vpop.f32.mrf.mxu0
          %v607 = vpop.f32.mrf.mxu0
          %608 = vdwg.mxu0
          %v609 = vstv %s551
          %v610 = vadd.s32 %v540, %v609
          %vm611 = vcmp.le.s32.totalorder %v610, %v538
          %v612 = vsel %vm611, %v604, -1e+30
          %v613 = vsel %vm562, %v612, -inf
          %614 = vmax.xlane.f32.xlu0 %v613
          %v615 = vpop.xlane.xlu0 %614
          %v616 = vmax.f32 %v548, %v615
          %v617 = vsub.f32 %v548, %v616
          %v618 = vmul.f32 %v617, 1.442695
          %v619 = vpow.pop %v618
          %v620 = vsub.f32 %v612, %v616
          %v621 = vmul.f32 %v620, 1.442695
          %v622 = vpow.pop %v621
          %v623 = vmul.f32 %v619, %v549
          %v624 = vsel %vm562, %v622, 0.0
          %625 = vadd.xlane.f32.xlu0 %v624
          %v626 = vpop.xlane.xlu0 %625
          %v627 = vadd.f32 %v623, %v626
          %v628 = vmul.f32 %v619, %v550
          %v629 = vpack.c.bf16 %v622, %v622
          %630 = vrot.lane.b32.xlu0 %v559, 64
          %v631 = vpop.permute.xlu0 %630
          %v633 = vsel %vm562, %v629, 0
          %vm635 = vcmask 1043456
          %v637 = vsel %vm635, %v631, 0
          %639 = vmatprep.subr.bf16.mxu0 0
          %640 = vmatpush1.bf16.msra.mxu0 0
          %641 = vmatprep.subr.bf16.mxu0 0
          %642 = vmatpush1.bf16.msra.mxu0 0
          %643 = vmatprep.subr.bf16.mxu0 0
          %644 = vmatpush1.bf16.msra.mxu0 0
          %645 = vmatprep.subr.bf16.mxu0 0
          %646 = vmatpush1.bf16.msra.mxu0 0
          %647 = vmatprep.subr.bf16.mxu0 0
          %648 = vmatpush1.bf16.msra.mxu0 0
          %649 = vmatprep.subr.bf16.mxu0 0
          %650 = vmatpush1.bf16.msra.mxu0 0
          %651 = vmatprep.subr.bf16.mxu0 0
          %652 = vmatpush1.bf16.msra.mxu0 0
          %653 = vmatprep.subr.bf16.mxu0 0
          %654 = vmatpush1.bf16.msra.mxu0 %v637
          %655 = vmatprep.subr.bf16.mxu0 0
          %656 = vmatpush2.bf16.msra.mxu0 0
          %657 = vmatprep.subr.bf16.mxu0 0
          %658 = vmatpush2.bf16.msra.mxu0 0
          %659 = vmatprep.subr.bf16.mxu0 0
          %660 = vmatpush2.bf16.msra.mxu0 0
          %661 = vmatprep.subr.bf16.mxu0 0
          %662 = vmatpush2.bf16.msra.mxu0 0
          %663 = vmatprep.subr.bf16.mxu0 0
          %664 = vmatpush2.bf16.msra.mxu0 0
          %665 = vmatprep.subr.bf16.mxu0 0
          %666 = vmatpush2.bf16.msra.mxu0 0
          %667 = vmatprep.subr.bf16.mxu0 0
          %668 = vmatpush2.bf16.msra.mxu0 0
          %669 = vmatprep.subr.bf16.mxu0 0
          %670 = vmatpush2.bf16.msra.mxu0 0
          %671 = vmatprep.mubr.bf16.mxu0 0
          %672 = vmatmul.mubr.bf16.gmra.mxu0 %v633
          %v673 = vpop.f32.mrf.mxu0
          %v674 = vadd.f32 0.0, %v673
          %v675 = vpop.f32.mrf.mxu0
          %v676 = vpop.f32.mrf.mxu0
          %v677 = vpop.f32.mrf.mxu0
          %678 = vdwg.mxu0
          %v679 = vadd.f32 %v628, %v674
        $region73: #{tpu_custom_call.1} parent=67 // loop_footer
          %s545 = sadd.s32 %s543, 1
        $region74: #{tpu_custom_call.1} parent=67 // loop_footer_branch
          %542 = sbr.rel target = $region70
        $region75: #{tpu_custom_call.1} parent=67 // loop_exit
          _
        %v680 = vrcp.pop %v549
        %v681 = vmul.f32 %v550, %v680
        %v682 = vpack.c.bf16 %v681, %v681
        %vm683 = vcmask 60416
        %684 = vst.msk [vmem:[#allocation3] sm:$0xf] %vm683, %v682
        // While loop
        $region76: #{tpu_custom_call.1} parent=67 // loop_pre_header
          _
        $region77: #{tpu_custom_call.1} parent=67 // loop_header
          %s686 = sphi 0, %s688
          %p687 = scmp.ge.s32.totalorder %s686, %s541
          %v691 = vphi -1e+30, %v762
          %v692 = vphi 0.0, %v773
          %v693 = vphi 0.0, %v825
        $region78: #{tpu_custom_call.1} parent=67 // loop_header_branch
          %690 = sbr.rel (%p687) target = $region82
        $region79: #{tpu_custom_call.1} parent=67 // loop_body
          %s694 = smul.u32 %s686, 8
          %s695 = sshra.s32 %s694, 3
          %s696 = sand.u32 %s694, 7
          %s697 = smul.addr %s695, 4
          %s698 = scalar_lea.vmem [#allocation2], %s697
          %v699 = vld [vmem:[%s698] sm:$0xf]
          %701 = vrot.lane.b32.xlu0 %v528, 120
          %v702 = vpop.permute.xlu0 %701
          %v704 = vunpack.c.l.b16 %v699
          %v705 = vpack.c.b16 %v704, %v704
          %706 = vrot.lane.b32.xlu0 %v705, 88
          %v707 = vpop.permute.xlu0 %706
          %vm708 = vcmask 64512
          %v710 = vsel %vm708, %v702, 0
          %v713 = vsel %vm708, %v707, 0
          %715 = vmatprep.subr.bf16.mxu0 0
          %716 = vmatpush1.bf16.xpose.msra.mxu0 0
          %717 = vmatprep.subr.bf16.mxu0 0
          %718 = vmatpush1.bf16.xpose.msra.mxu0 0
          %719 = vmatprep.subr.bf16.mxu0 0
          %720 = vmatpush1.bf16.xpose.msra.mxu0 0
          %721 = vmatprep.subr.bf16.mxu0 0
          %722 = vmatpush1.bf16.xpose.msra.mxu0 0
          %723 = vmatprep.subr.bf16.mxu0 0
          %724 = vmatpush1.bf16.xpose.msra.mxu0 0
          %725 = vmatprep.subr.bf16.mxu0 0
          %726 = vmatpush1.bf16.xpose.msra.mxu0 0
          %727 = vmatprep.subr.bf16.mxu0 0
          %728 = vmatpush1.bf16.xpose.msra.mxu0 0
          %729 = vmatprep.subr.bf16.mxu0 0
          %730 = vmatpush1.bf16.xpose.msra.mxu0 %v713
          %731 = vmatprep.subr.bf16.mxu0 0
          %732 = vmatpush2.bf16.xpose.msra.mxu0 0
          %733 = vmatprep.subr.bf16.mxu0 0
          %734 = vmatpush2.bf16.xpose.msra.mxu0 0
          %735 = vmatprep.subr.bf16.mxu0 0
          %736 = vmatpush2.bf16.xpose.msra.mxu0 0
          %737 = vmatprep.subr.bf16.mxu0 0
          %738 = vmatpush2.bf16.xpose.msra.mxu0 0
          %739 = vmatprep.subr.bf16.mxu0 0
          %740 = vmatpush2.bf16.xpose.msra.mxu0 0
          %741 = vmatprep.subr.bf16.mxu0 0
          %742 = vmatpush2.bf16.xpose.msra.mxu0 0
          %743 = vmatprep.subr.bf16.mxu0 0
          %744 = vmatpush2.bf16.xpose.msra.mxu0 0
          %745 = vmatprep.subr.bf16.mxu0 0
          %746 = vmatpush2.bf16.xpose.msra.mxu0 0
          %747 = vmatprep.mubr.bf16.mxu0 0
          %748 = vmatmul.mubr.bf16.gmra.mxu0 %v710
          %v749 = vpop.f32.mrf.mxu0
          %v750 = vadd.f32 0.0, %v749
          %v751 = vpop.f32.mrf.mxu0
          %v752 = vpop.f32.mrf.mxu0
          %v753 = vpop.f32.mrf.mxu0
          %754 = vdwg.mxu0
          %v755 = vstv %s694
          %v756 = vadd.s32 %v540, %v755
          %vm757 = vcmp.le.s32.totalorder %v756, %v538
          %v758 = vsel %vm757, %v750, -1e+30
          %v759 = vsel %vm708, %v758, -inf
          %760 = vmax.xlane.f32.xlu0 %v759
          %v761 = vpop.xlane.xlu0 %760
          %v762 = vmax.f32 %v691, %v761
          %v763 = vsub.f32 %v691, %v762
          %v764 = vmul.f32 %v763, 1.442695
          %v765 = vpow.pop %v764
          %v766 = vsub.f32 %v758, %v762
          %v767 = vmul.f32 %v766, 1.442695
          %v768 = vpow.pop %v767
          %v769 = vmul.f32 %v765, %v692
          %v770 = vsel %vm708, %v768, 0.0
          %771 = vadd.xlane.f32.xlu0 %v770
          %v772 = vpop.xlane.xlu0 %771
          %v773 = vadd.f32 %v769, %v772
          %v774 = vmul.f32 %v765, %v693
          %v775 = vpack.c.bf16 %v768, %v768
          %776 = vrot.lane.b32.xlu0 %v705, 56
          %v777 = vpop.permute.xlu0 %776
          %v779 = vsel %vm708, %v775, 0
          %vm781 = vcmask 1043456
          %v783 = vsel %vm781, %v777, 0
          %785 = vmatprep.subr.bf16.mxu0 0
          %786 = vmatpush1.bf16.msra.mxu0 0
          %787 = vmatprep.subr.bf16.mxu0 0
          %788 = vmatpush1.bf16.msra.mxu0 0
          %789 = vmatprep.subr.bf16.mxu0 0
          %790 = vmatpush1.bf16.msra.mxu0 0
          %791 = vmatprep.subr.bf16.mxu0 0
          %792 = vmatpush1.bf16.msra.mxu0 0
          %793 = vmatprep.subr.bf16.mxu0 0
          %794 = vmatpush1.bf16.msra.mxu0 0
          %795 = vmatprep.subr.bf16.mxu0 0
          %796 = vmatpush1.bf16.msra.mxu0 0
          %797 = vmatprep.subr.bf16.mxu0 0
          %798 = vmatpush1.bf16.msra.mxu0 0
          %799 = vmatprep.subr.bf16.mxu0 0
          %800 = vmatpush1.bf16.msra.mxu0 %v783
          %801 = vmatprep.subr.bf16.mxu0 0
          %802 = vmatpush2.bf16.msra.mxu0 0
          %803 = vmatprep.subr.bf16.mxu0 0
          %804 = vmatpush2.bf16.msra.mxu0 0
          %805 = vmatprep.subr.bf16.mxu0 0
          %806 = vmatpush2.bf16.msra.mxu0 0
          %807 = vmatprep.subr.bf16.mxu0 0
          %808 = vmatpush2.bf16.msra.mxu0 0
          %809 = vmatprep.subr.bf16.mxu0 0
          %810 = vmatpush2.bf16.msra.mxu0 0
          %811 = vmatprep.subr.bf16.mxu0 0
          %812 = vmatpush2.bf16.msra.mxu0 0
          %813 = vmatprep.subr.bf16.mxu0 0
          %814 = vmatpush2.bf16.msra.mxu0 0
          %815 = vmatprep.subr.bf16.mxu0 0
          %816 = vmatpush2.bf16.msra.mxu0 0
          %817 = vmatprep.mubr.bf16.mxu0 0
          %818 = vmatmul.mubr.bf16.gmra.mxu0 %v779
          %v819 = vpop.f32.mrf.mxu0
          %v820 = vadd.f32 0.0, %v819
          %v821 = vpop.f32.mrf.mxu0
          %v822 = vpop.f32.mrf.mxu0
          %v823 = vpop.f32.mrf.mxu0
          %824 = vdwg.mxu0
          %v825 = vadd.f32 %v774, %v820
        $region80: #{tpu_custom_call.1} parent=67 // loop_footer
          %s688 = sadd.s32 %s686, 1
        $region81: #{tpu_custom_call.1} parent=67 // loop_footer_branch
          %685 = sbr.rel target = $region77
        $region82: #{tpu_custom_call.1} parent=67 // loop_exit
          _
        %v826 = vrcp.pop %v692
        %v827 = vmul.f32 %v693, %v826
        %v828 = vpack.c.bf16 %v827, %v827
        %v830 = vunpack.c.l.b16 %v828
        %v831 = vpack.c.b16 %v830, %v830
        %832 = vrot.lane.b32.xlu0 %v831, 8
        %v833 = vpop.permute.xlu0 %832
        %vm835 = vcmask 126016
        %836 = vst.msk [vmem:[#allocation3] sm:$0xf] %vm835, %v833
        // While loop
        $region83: #{tpu_custom_call.1} parent=67 // loop_pre_header
          _
        $region84: #{tpu_custom_call.1} parent=67 // loop_header
          %s838 = sphi 0, %s840
          %p839 = scmp.ge.s32.totalorder %s838, %s541
          %v843 = vphi -1e+30, %v914
          %v844 = vphi 0.0, %v925
          %v845 = vphi 0.0, %v977
        $region85: #{tpu_custom_call.1} parent=67 // loop_header_branch
          %842 = sbr.rel (%p839) target = $region89
        $region86: #{tpu_custom_call.1} parent=67 // loop_body
          %s846 = smul.u32 %s838, 8
          %s847 = sshra.s32 %s846, 3
          %s848 = sand.u32 %s846, 7
          %s849 = smul.addr %s847, 4
          %s850 = scalar_lea.vmem [#allocation2], %s849
          %v851 = vld [vmem:[%s850] sm:$0xf]
          %853 = vrot.lane.b32.xlu0 %v528, 112
          %v854 = vpop.permute.xlu0 %853
          %v856 = vunpack.c.l.b16 %v851
          %v857 = vpack.c.b16 %v856, %v856
          %858 = vrot.lane.b32.xlu0 %v857, 80
          %v859 = vpop.permute.xlu0 %858
          %vm860 = vcmask 64512
          %v862 = vsel %vm860, %v854, 0
          %v865 = vsel %vm860, %v859, 0
          %867 = vmatprep.subr.bf16.mxu0 0
          %868 = vmatpush1.bf16.xpose.msra.mxu0 0
          %869 = vmatprep.subr.bf16.mxu0 0
          %870 = vmatpush1.bf16.xpose.msra.mxu0 0
          %871 = vmatprep.subr.bf16.mxu0 0
          %872 = vmatpush1.bf16.xpose.msra.mxu0 0
          %873 = vmatprep.subr.bf16.mxu0 0
          %874 = vmatpush1.bf16.xpose.msra.mxu0 0
          %875 = vmatprep.subr.bf16.mxu0 0
          %876 = vmatpush1.bf16.xpose.msra.mxu0 0
          %877 = vmatprep.subr.bf16.mxu0 0
          %878 = vmatpush1.bf16.xpose.msra.mxu0 0
          %879 = vmatprep.subr.bf16.mxu0 0
          %880 = vmatpush1.bf16.xpose.msra.mxu0 0
          %881 = vmatprep.subr.bf16.mxu0 0
          %882 = vmatpush1.bf16.xpose.msra.mxu0 %v865
          %883 = vmatprep.subr.bf16.mxu0 0
          %884 = vmatpush2.bf16.xpose.msra.mxu0 0
          %885 = vmatprep.subr.bf16.mxu0 0
          %886 = vmatpush2.bf16.xpose.msra.mxu0 0
          %887 = vmatprep.subr.bf16.mxu0 0
          %888 = vmatpush2.bf16.xpose.msra.mxu0 0
          %889 = vmatprep.subr.bf16.mxu0 0
          %890 = vmatpush2.bf16.xpose.msra.mxu0 0
          %891 = vmatprep.subr.bf16.mxu0 0
          %892 = vmatpush2.bf16.xpose.msra.mxu0 0
          %893 = vmatprep.subr.bf16.mxu0 0
          %894 = vmatpush2.bf16.xpose.msra.mxu0 0
          %895 = vmatprep.subr.bf16.mxu0 0
          %896 = vmatpush2.bf16.xpose.msra.mxu0 0
          %897 = vmatprep.subr.bf16.mxu0 0
          %898 = vmatpush2.bf16.xpose.msra.mxu0 0
          %899 = vmatprep.mubr.bf16.mxu0 0
          %900 = vmatmul.mubr.bf16.gmra.mxu0 %v862
          %v901 = vpop.f32.mrf.mxu0
          %v902 = vadd.f32 0.0, %v901
          %v903 = vpop.f32.mrf.mxu0
          %v904 = vpop.f32.mrf.mxu0
          %v905 = vpop.f32.mrf.mxu0
          %906 = vdwg.mxu0
          %v907 = vstv %s846
          %v908 = vadd.s32 %v540, %v907
          %vm909 = vcmp.le.s32.totalorder %v908, %v538
          %v910 = vsel %vm909, %v902, -1e+30
          %v911 = vsel %vm860, %v910, -inf
          %912 = vmax.xlane.f32.xlu0 %v911
          %v913 = vpop.xlane.xlu0 %912
          %v914 = vmax.f32 %v843, %v913
          %v915 = vsub.f32 %v843, %v914
          %v916 = vmul.f32 %v915, 1.442695
          %v917 = vpow.pop %v916
          %v918 = vsub.f32 %v910, %v914
          %v919 = vmul.f32 %v918, 1.442695
          %v920 = vpow.pop %v919
          %v921 = vmul.f32 %v917, %v844
          %v922 = vsel %vm860, %v920, 0.0
          %923 = vadd.xlane.f32.xlu0 %v922
          %v924 = vpop.xlane.xlu0 %923
          %v925 = vadd.f32 %v921, %v924
          %v926 = vmul.f32 %v917, %v845
          %v927 = vpack.c.bf16 %v920, %v920
          %928 = vrot.lane.b32.xlu0 %v857, 48
          %v929 = vpop.permute.xlu0 %928
          %v931 = vsel %vm860, %v927, 0
          %vm933 = vcmask 1043456
          %v935 = vsel %vm933, %v929, 0
          %937 = vmatprep.subr.bf16.mxu0 0
          %938 = vmatpush1.bf16.msra.mxu0 0
          %939 = vmatprep.subr.bf16.mxu0 0
          %940 = vmatpush1.bf16.msra.mxu0 0
          %941 = vmatprep.subr.bf16.mxu0 0
          %942 = vmatpush1.bf16.msra.mxu0 0
          %943 = vmatprep.subr.bf16.mxu0 0
          %944 = vmatpush1.bf16.msra.mxu0 0
          %945 = vmatprep.subr.bf16.mxu0 0
          %946 = vmatpush1.bf16.msra.mxu0 0
          %947 = vmatprep.subr.bf16.mxu0 0
          %948 = vmatpush1.bf16.msra.mxu0 0
          %949 = vmatprep.subr.bf16.mxu0 0
          %950 = vmatpush1.bf16.msra.mxu0 0
          %951 = vmatprep.subr.bf16.mxu0 0
          %952 = vmatpush1.bf16.msra.mxu0 %v935
          %953 = vmatprep.subr.bf16.mxu0 0
          %954 = vmatpush2.bf16.msra.mxu0 0
          %955 = vmatprep.subr.bf16.mxu0 0
          %956 = vmatpush2.bf16.msra.mxu0 0
          %957 = vmatprep.subr.bf16.mxu0 0
          %958 = vmatpush2.bf16.msra.mxu0 0
          %959 = vmatprep.subr.bf16.mxu0 0
          %960 = vmatpush2.bf16.msra.mxu0 0
          %961 = vmatprep.subr.bf16.mxu0 0
          %962 = vmatpush2.bf16.msra.mxu0 0
          %963 = vmatprep.subr.bf16.mxu0 0
          %964 = vmatpush2.bf16.msra.mxu0 0
          %965 = vmatprep.subr.bf16.mxu0 0
          %966 = vmatpush2.bf16.msra.mxu0 0
          %967 = vmatprep.subr.bf16.mxu0 0
          %968 = vmatpush2.bf16.msra.mxu0 0
          %969 = vmatprep.mubr.bf16.mxu0 0
          %970 = vmatmul.mubr.bf16.gmra.mxu0 %v931
          %v971 = vpop.f32.mrf.mxu0
          %v972 = vadd.f32 0.0, %v971
          %v973 = vpop.f32.mrf.mxu0
          %v974 = vpop.f32.mrf.mxu0
          %v975 = vpop.f32.mrf.mxu0
          %976 = vdwg.mxu0
          %v977 = vadd.f32 %v926, %v972
        $region87: #{tpu_custom_call.1} parent=67 // loop_footer
          %s840 = sadd.s32 %s838, 1
        $region88: #{tpu_custom_call.1} parent=67 // loop_footer_branch
          %837 = sbr.rel target = $region84
        $region89: #{tpu_custom_call.1} parent=67 // loop_exit
          _
        %v978 = vrcp.pop %v844
        %v979 = vmul.f32 %v845, %v978
        %v980 = vpack.c.bf16 %v979, %v979
        %v982 = vunpack.c.l.b16 %v980
        %v983 = vpack.c.b16 %v982, %v982
        %984 = vrot.lane.b32.xlu0 %v983, 16
        %v985 = vpop.permute.xlu0 %984
        %vm987 = vcmask 191616
        %988 = vst.msk [vmem:[#allocation3] sm:$0xf] %vm987, %v985
        // While loop
        $region90: #{tpu_custom_call.1} parent=67 // loop_pre_header
          _
        $region91: #{tpu_custom_call.1} parent=67 // loop_header
          %s990 = sphi 0, %s992
          %p991 = scmp.ge.s32.totalorder %s990, %s541
          %v995 = vphi -1e+30, %v1066
          %v996 = vphi 0.0, %v1077
          %v997 = vphi 0.0, %v1129
        $region92: #{tpu_custom_call.1} parent=67 // loop_header_branch
          %994 = sbr.rel (%p991) target = $region96
        $region93: #{tpu_custom_call.1} parent=67 // loop_body
          %s998 = smul.u32 %s990, 8
          %s999 = sshra.s32 %s998, 3
          %s1000 = sand.u32 %s998, 7
          %s1001 = smul.addr %s999, 4
          %s1002 = scalar_lea.vmem [#allocation2], %s1001
          %v1003 = vld [vmem:[%s1002] sm:$0xf]
          %1005 = vrot.lane.b32.xlu0 %v528, 104
          %v1006 = vpop.permute.xlu0 %1005
          %v1008 = vunpack.c.l.b16 %v1003
          %v1009 = vpack.c.b16 %v1008, %v1008
          %1010 = vrot.lane.b32.xlu0 %v1009, 72
          %v1011 = vpop.permute.xlu0 %1010
          %vm1012 = vcmask 64512
          %v1014 = vsel %vm1012, %v1006, 0
          %v1017 = vsel %vm1012, %v1011, 0
          %1019 = vmatprep.subr.bf16.mxu0 0
          %1020 = vmatpush1.bf16.xpose.msra.mxu0 0
          %1021 = vmatprep.subr.bf16.mxu0 0
          %1022 = vmatpush1.bf16.xpose.msra.mxu0 0
          %1023 = vmatprep.subr.bf16.mxu0 0
          %1024 = vmatpush1.bf16.xpose.msra.mxu0 0
          %1025 = vmatprep.subr.bf16.mxu0 0
          %1026 = vmatpush1.bf16.xpose.msra.mxu0 0
          %1027 = vmatprep.subr.bf16.mxu0 0
          %1028 = vmatpush1.bf16.xpose.msra.mxu0 0
          %1029 = vmatprep.subr.bf16.mxu0 0
          %1030 = vmatpush1.bf16.xpose.msra.mxu0 0
          %1031 = vmatprep.subr.bf16.mxu0 0
          %1032 = vmatpush1.bf16.xpose.msra.mxu0 0
          %1033 = vmatprep.subr.bf16.mxu0 0
          %1034 = vmatpush1.bf16.xpose.msra.mxu0 %v1017
          %1035 = vmatprep.subr.bf16.mxu0 0
          %1036 = vmatpush2.bf16.xpose.msra.mxu0 0
          %1037 = vmatprep.subr.bf16.mxu0 0
          %1038 = vmatpush2.bf16.xpose.msra.mxu0 0
          %1039 = vmatprep.subr.bf16.mxu0 0
          %1040 = vmatpush2.bf16.xpose.msra.mxu0 0
          %1041 = vmatprep.subr.bf16.mxu0 0
          %1042 = vmatpush2.bf16.xpose.msra.mxu0 0
          %1043 = vmatprep.subr.bf16.mxu0 0
          %1044 = vmatpush2.bf16.xpose.msra.mxu0 0
          %1045 = vmatprep.subr.bf16.mxu0 0
          %1046 = vmatpush2.bf16.xpose.msra.mxu0 0
          %1047 = vmatprep.subr.bf16.mxu0 0
          %1048 = vmatpush2.bf16.xpose.msra.mxu0 0
          %1049 = vmatprep.subr.bf16.mxu0 0
          %1050 = vmatpush2.bf16.xpose.msra.mxu0 0
          %1051 = vmatprep.mubr.bf16.mxu0 0
          %1052 = vmatmul.mubr.bf16.gmra.mxu0 %v1014
          %v1053 = vpop.f32.mrf.mxu0
          %v1054 = vadd.f32 0.0, %v1053
          %v1055 = vpop.f32.mrf.mxu0
          %v1056 = vpop.f32.mrf.mxu0
          %v1057 = vpop.f32.mrf.mxu0
          %1058 = vdwg.mxu0
          %v1059 = vstv %s998
          %v1060 = vadd.s32 %v540, %v1059
          %vm1061 = vcmp.le.s32.totalorder %v1060, %v538
          %v1062 = vsel %vm1061, %v1054, -1e+30
          %v1063 = vsel %vm1012, %v1062, -inf
          %1064 = vmax.xlane.f32.xlu0 %v1063
          %v1065 = vpop.xlane.xlu0 %1064
          %v1066 = vmax.f32 %v995, %v1065
          %v1067 = vsub.f32 %v995, %v1066
          %v1068 = vmul.f32 %v1067, 1.442695
          %v1069 = vpow.pop %v1068
          %v1070 = vsub.f32 %v1062, %v1066
          %v1071 = vmul.f32 %v1070, 1.442695
          %v1072 = vpow.pop %v1071
          %v1073 = vmul.f32 %v1069, %v996
          %v1074 = vsel %vm1012, %v1072, 0.0
          %1075 = vadd.xlane.f32.xlu0 %v1074
          %v1076 = vpop.xlane.xlu0 %1075
          %v1077 = vadd.f32 %v1073, %v1076
          %v1078 = vmul.f32 %v1069, %v997
          %v1079 = vpack.c.bf16 %v1072, %v1072
          %1080 = vrot.lane.b32.xlu0 %v1009, 40
          %v1081 = vpop.permute.xlu0 %1080
          %v1083 = vsel %vm1012, %v1079, 0
          %vm1085 = vcmask 1043456
          %v1087 = vsel %vm1085, %v1081, 0
          %1089 = vmatprep.subr.bf16.mxu0 0
          %1090 = vmatpush1.bf16.msra.mxu0 0
          %1091 = vmatprep.subr.bf16.mxu0 0
          %1092 = vmatpush1.bf16.msra.mxu0 0
          %1093 = vmatprep.subr.bf16.mxu0 0
          %1094 = vmatpush1.bf16.msra.mxu0 0
          %1095 = vmatprep.subr.bf16.mxu0 0
          %1096 = vmatpush1.bf16.msra.mxu0 0
          %1097 = vmatprep.subr.bf16.mxu0 0
          %1098 = vmatpush1.bf16.msra.mxu0 0
          %1099 = vmatprep.subr.bf16.mxu0 0
          %1100 = vmatpush1.bf16.msra.mxu0 0
          %1101 = vmatprep.subr.bf16.mxu0 0
          %1102 = vmatpush1.bf16.msra.mxu0 0
          %1103 = vmatprep.subr.bf16.mxu0 0
          %1104 = vmatpush1.bf16.msra.mxu0 %v1087
          %1105 = vmatprep.subr.bf16.mxu0 0
          %1106 = vmatpush2.bf16.msra.mxu0 0
          %1107 = vmatprep.subr.bf16.mxu0 0
          %1108 = vmatpush2.bf16.msra.mxu0 0
          %1109 = vmatprep.subr.bf16.mxu0 0
          %1110 = vmatpush2.bf16.msra.mxu0 0
          %1111 = vmatprep.subr.bf16.mxu0 0
          %1112 = vmatpush2.bf16.msra.mxu0 0
          %1113 = vmatprep.subr.bf16.mxu0 0
          %1114 = vmatpush2.bf16.msra.mxu0 0
          %1115 = vmatprep.subr.bf16.mxu0 0
          %1116 = vmatpush2.bf16.msra.mxu0 0
          %1117 = vmatprep.subr.bf16.mxu0 0
          %1118 = vmatpush2.bf16.msra.mxu0 0
          %1119 = vmatprep.subr.bf16.mxu0 0
          %1120 = vmatpush2.bf16.msra.mxu0 0
          %1121 = vmatprep.mubr.bf16.mxu0 0
          %1122 = vmatmul.mubr.bf16.gmra.mxu0 %v1083
          %v1123 = vpop.f32.mrf.mxu0
          %v1124 = vadd.f32 0.0, %v1123
          %v1125 = vpop.f32.mrf.mxu0
          %v1126 = vpop.f32.mrf.mxu0
          %v1127 = vpop.f32.mrf.mxu0
          %1128 = vdwg.mxu0
          %v1129 = vadd.f32 %v1078, %v1124
        $region94: #{tpu_custom_call.1} parent=67 // loop_footer
          %s992 = sadd.s32 %s990, 1
        $region95: #{tpu_custom_call.1} parent=67 // loop_footer_branch
          %989 = sbr.rel target = $region91
        $region96: #{tpu_custom_call.1} parent=67 // loop_exit
          _
        %v1130 = vrcp.pop %v996
        %v1131 = vmul.f32 %v997, %v1130
        %v1132 = vpack.c.bf16 %v1131, %v1131
        %v1134 = vunpack.c.l.b16 %v1132
        %v1135 = vpack.c.b16 %v1134, %v1134
        %1136 = vrot.lane.b32.xlu0 %v1135, 24
        %v1137 = vpop.permute.xlu0 %1136
        %vm1139 = vcmask 257216
        %1140 = vst.msk [vmem:[#allocation3] sm:$0xf] %vm1139, %v1137
        %v1141 = vld [vmem:[#allocation3] sm:$0xf]
        %v1142 = vld [vmem:[%s6] sm:$0xf]
        %v1143 = vld [vmem:[%s6 + $0x4] sm:$0xf]
        %v1144 = vld [vmem:[%s6 + $0x8] sm:$0xf]
        %v1145 = vld [vmem:[%s6 + $0xc] sm:$0xf]
        %v1150 = vunpack.c.l.b16 %v1142
        %v1151 = vunpack.c.l.b16 %v1143
        %v1152 = vunpack.c.l.b16 %v1144
        %v1153 = vunpack.c.l.b16 %v1145
        %v1154 = vpack.c.b16 %v1151, %v1150
        %v1155 = vpack.c.b16 %v1153, %v1152
        %v1159 = vsel %vm439, %v1141, 0
        %1161 = vmatprep.subr.bf16.mxu0 0
        %1162 = vmatpush1.bf16.msra.mxu0 0
        %1163 = vmatprep.subr.bf16.mxu0 0
        %1164 = vmatpush1.bf16.msra.mxu0 0
        %1165 = vmatprep.subr.bf16.mxu0 0
        %1166 = vmatpush1.bf16.msra.mxu0 0
        %1167 = vmatprep.subr.bf16.mxu0 0
        %1168 = vmatpush1.bf16.msra.mxu0 0
        %1169 = vmatprep.subr.bf16.mxu0 0
        %1170 = vmatpush1.bf16.msra.mxu0 0
        %1171 = vmatprep.subr.bf16.mxu0 0
        %1172 = vmatpush1.bf16.msra.mxu0 0
        %1173 = vmatprep.subr.bf16.mxu0 0
        %1174 = vmatpush1.bf16.msra.mxu0 %v1155
        %1175 = vmatprep.subr.bf16.mxu0 0
        %1176 = vmatpush1.bf16.msra.mxu0 %v1154
        %1177 = vmatprep.subr.bf16.mxu0 0
        %1178 = vmatpush2.bf16.msra.mxu0 0
        %1179 = vmatprep.subr.bf16.mxu0 0
        %1180 = vmatpush2.bf16.msra.mxu0 0
        %1181 = vmatprep.subr.bf16.mxu0 0
        %1182 = vmatpush2.bf16.msra.mxu0 0
        %1183 = vmatprep.subr.bf16.mxu0 0
        %1184 = vmatpush2.bf16.msra.mxu0 0
        %1185 = vmatprep.subr.bf16.mxu0 0
        %1186 = vmatpush2.bf16.msra.mxu0 0
        %1187 = vmatprep.subr.bf16.mxu0 0
        %1188 = vmatpush2.bf16.msra.mxu0 0
        %1189 = vmatprep.subr.bf16.mxu0 0
        %1190 = vmatpush2.bf16.msra.mxu0 0
        %1191 = vmatprep.subr.bf16.mxu0 0
        %1192 = vmatpush2.bf16.msra.mxu0 0
        %1193 = vmatprep.mubr.bf16.mxu0 0
        %1194 = vmatmul.mubr.bf16.gmra.mxu0 %v1159
        %v1195 = vpop.f32.mrf.mxu0
        %v1196 = vadd.f32 0.0, %v1195
        %v1197 = vpop.f32.mrf.mxu0
        %v1198 = vpop.f32.mrf.mxu0
        %v1199 = vpop.f32.mrf.mxu0
        %1200 = vdwg.mxu0
        %v1201 = vadd.f32 %v436, %v1196
        %v1202 = vld [vmem:[%s7] sm:$0x1]
        %v1204 = vlaneseq
        %v1205 = vshrl.u32 %v1204, 7
        %v1206 = vsub.s32 0, %v1205
        %v1207 = vrot.slane %v1202, %v1206
        %v1209 = vadd.f32 %v1201, %v1207
        %v1210 = vld [vmem:[%s3] sm:$0x1]
        %v1211 = vld [vmem:[%s4] sm:$0x1]
        %v1212 = vsel %vm439, %v1209, 0.0
        %1213 = vadd.xlane.f32.xlu0 %v1212
        %v1214 = vpop.xlane.xlu0 %1213
        %v1215 = vmul.f32 %v1214, %v443
        %v1216 = vsub.f32 %v1209, %v1215
        %v1217 = vmul.f32 %v1216, %v1216
        %v1218 = vsel %vm439, %v1217, 0.0
        %1219 = vadd.xlane.f32.xlu0 %v1218
        %v1220 = vpop.xlane.xlu0 %1219
        %v1221 = vmul.f32 %v1220, %v443
        %v1222 = vadd.f32 %v1221, 1e-05
        %v1223 = vrsqrt.pop %v1222
        %v1224 = vmul.f32 %v1216, %v1223
        %v1226 = vlaneseq
        %v1227 = vshrl.u32 %v1226, 7
        %v1228 = vsub.s32 0, %v1227
        %v1229 = vrot.slane %v1210, %v1228
        %v1231 = vmul.f32 %v1224, %v1229
        %v1233 = vlaneseq
        %v1234 = vshrl.u32 %v1233, 7
        %v1235 = vsub.s32 0, %v1234
        %v1236 = vrot.slane %v1211, %v1235
        %v1238 = vadd.f32 %v1231, %v1236
        %v1239 = vpack.c.bf16 %v1238, %v1238
        %v1240 = vld [vmem:[%s8] sm:$0xf]
        %v1241 = vld [vmem:[%s8 + $0x4] sm:$0xf]
        %v1242 = vld [vmem:[%s8 + $0x8] sm:$0xf]
        %v1243 = vld [vmem:[%s8 + $0xc] sm:$0xf]
        %v1244 = vld [vmem:[%s9] sm:$0x1]
        %v1246 = vlaneseq
        %v1247 = vshrl.u32 %v1246, 7
        %v1248 = vsub.s32 0, %v1247
        %v1249 = vrot.slane %v1244, %v1248
        %v1255 = vunpack.c.l.b16 %v1240
        %v1256 = vunpack.c.l.b16 %v1241
        %v1257 = vunpack.c.l.b16 %v1242
        %v1258 = vunpack.c.l.b16 %v1243
        %v1259 = vpack.c.b16 %v1256, %v1255
        %v1260 = vpack.c.b16 %v1258, %v1257
        %v1264 = vsel %vm439, %v1239, 0
        %1266 = vmatprep.subr.bf16.mxu0 0
        %1267 = vmatpush1.bf16.msra.mxu0 0
        %1268 = vmatprep.subr.bf16.mxu0 0
        %1269 = vmatpush1.bf16.msra.mxu0 0
        %1270 = vmatprep.subr.bf16.mxu0 0
        %1271 = vmatpush1.bf16.msra.mxu0 0
        %1272 = vmatprep.subr.bf16.mxu0 0
        %1273 = vmatpush1.bf16.msra.mxu0 0
        %1274 = vmatprep.subr.bf16.mxu0 0
        %1275 = vmatpush1.bf16.msra.mxu0 0
        %1276 = vmatprep.subr.bf16.mxu0 0
        %1277 = vmatpush1.bf16.msra.mxu0 0
        %1278 = vmatprep.subr.bf16.mxu0 0
        %1279 = vmatpush1.bf16.msra.mxu0 %v1260
        %1280 = vmatprep.subr.bf16.mxu0 0
        %1281 = vmatpush1.bf16.msra.mxu0 %v1259
        %1282 = vmatprep.subr.bf16.mxu0 0
        %1283 = vmatpush2.bf16.msra.mxu0 0
        %1284 = vmatprep.subr.bf16.mxu0 0
        %1285 = vmatpush2.bf16.msra.mxu0 0
        %1286 = vmatprep.subr.bf16.mxu0 0
        %1287 = vmatpush2.bf16.msra.mxu0 0
        %1288 = vmatprep.subr.bf16.mxu0 0
        %1289 = vmatpush2.bf16.msra.mxu0 0
        %1290 = vmatprep.subr.bf16.mxu0 0
        %1291 = vmatpush2.bf16.msra.mxu0 0
        %1292 = vmatprep.subr.bf16.mxu0 0
        %1293 = vmatpush2.bf16.msra.mxu0 0
        %1294 = vmatprep.subr.bf16.mxu0 0
        %1295 = vmatpush2.bf16.msra.mxu0 0
        %1296 = vmatprep.subr.bf16.mxu0 0
        %1297 = vmatpush2.bf16.msra.mxu0 0
        %1298 = vmatprep.mubr.bf16.mxu0 0
        %1299 = vmatmul.mubr.bf16.gmra.mxu0 %v1264
        %v1300 = vpop.f32.mrf.mxu0
        %v1301 = vadd.f32 %v1249, %v1300
        %v1302 = vpop.f32.mrf.mxu0
        %v1303 = vpop.f32.mrf.mxu0
        %v1304 = vpop.f32.mrf.mxu0
        %1305 = vdwg.mxu0
        %v1306 = vmul.f32 %v1301, 0.5
        %v1307 = vmul.f32 %v1301, 0.70710677
        %v1308 = verf.f32.pop %v1307
        %v1309 = vadd.f32 %v1308, 1.0
        %v1310 = vmul.f32 %v1306, %v1309
        %v1311 = vpack.c.bf16 %v1310, %v1310
        %v1312 = vld [vmem:[%s10] sm:$0xf]
        %v1313 = vld [vmem:[%s10 + $0x4] sm:$0xf]
        %v1314 = vld [vmem:[%s10 + $0x8] sm:$0xf]
        %v1315 = vld [vmem:[%s10 + $0xc] sm:$0xf]
        %v1316 = vld [vmem:[%s10 + $0x10] sm:$0xf]
        %v1317 = vld [vmem:[%s10 + $0x14] sm:$0xf]
        %v1318 = vld [vmem:[%s10 + $0x18] sm:$0xf]
        %v1319 = vld [vmem:[%s10 + $0x1c] sm:$0xf]
        %v1320 = vld [vmem:[%s10 + $0x20] sm:$0xf]
        %v1321 = vld [vmem:[%s10 + $0x24] sm:$0xf]
        %v1322 = vld [vmem:[%s10 + $0x28] sm:$0xf]
        %v1323 = vld [vmem:[%s10 + $0x2c] sm:$0xf]
        %v1324 = vld [vmem:[%s10 + $0x30] sm:$0xf]
        %v1325 = vld [vmem:[%s10 + $0x34] sm:$0xf]
        %v1326 = vld [vmem:[%s10 + $0x38] sm:$0xf]
        %v1327 = vld [vmem:[%s10 + $0x3c] sm:$0xf]
        %v1328 = vld [vmem:[%s11] sm:$0x1]
        %v1330 = vlaneseq
        %v1331 = vshrl.u32 %v1330, 7
        %v1332 = vsub.s32 0, %v1331
        %v1333 = vrot.slane %v1328, %v1332
        %v1351 = vunpack.c.l.b16 %v1312
        %v1352 = vunpack.c.l.b16 %v1313
        %v1353 = vunpack.c.l.b16 %v1314
        %v1354 = vunpack.c.l.b16 %v1315
        %v1355 = vunpack.c.l.b16 %v1316
        %v1356 = vunpack.c.l.b16 %v1317
        %v1357 = vunpack.c.l.b16 %v1318
        %v1358 = vunpack.c.l.b16 %v1319
        %v1359 = vunpack.c.l.b16 %v1320
        %v1360 = vunpack.c.l.b16 %v1321
        %v1361 = vunpack.c.l.b16 %v1322
        %v1362 = vunpack.c.l.b16 %v1323
        %v1363 = vunpack.c.l.b16 %v1324
        %v1364 = vunpack.c.l.b16 %v1325
        %v1365 = vunpack.c.l.b16 %v1326
        %v1366 = vunpack.c.l.b16 %v1327
        %v1367 = vpack.c.b16 %v1352, %v1351
        %v1368 = vpack.c.b16 %v1354, %v1353
        %v1369 = vpack.c.b16 %v1356, %v1355
        %v1370 = vpack.c.b16 %v1358, %v1357
        %v1371 = vpack.c.b16 %v1360, %v1359
        %v1372 = vpack.c.b16 %v1362, %v1361
        %v1373 = vpack.c.b16 %v1364, %v1363
        %v1374 = vpack.c.b16 %v1366, %v1365
        %1383 = vmatprep.subr.bf16.mxu0 0
        %1384 = vmatpush1.bf16.msra.mxu0 %v1374
        %1385 = vmatprep.subr.bf16.mxu0 0
        %1386 = vmatpush1.bf16.msra.mxu0 %v1373
        %1387 = vmatprep.subr.bf16.mxu0 0
        %1388 = vmatpush1.bf16.msra.mxu0 %v1372
        %1389 = vmatprep.subr.bf16.mxu0 0
        %1390 = vmatpush1.bf16.msra.mxu0 %v1371
        %1391 = vmatprep.subr.bf16.mxu0 0
        %1392 = vmatpush1.bf16.msra.mxu0 %v1370
        %1393 = vmatprep.subr.bf16.mxu0 0
        %1394 = vmatpush1.bf16.msra.mxu0 %v1369
        %1395 = vmatprep.subr.bf16.mxu0 0
        %1396 = vmatpush1.bf16.msra.mxu0 %v1368
        %1397 = vmatprep.subr.bf16.mxu0 0
        %1398 = vmatpush1.bf16.msra.mxu0 %v1367
        %1399 = vmatprep.subr.bf16.mxu0 0
        %1400 = vmatpush2.bf16.msra.mxu0 0
        %1401 = vmatprep.subr.bf16.mxu0 0
        %1402 = vmatpush2.bf16.msra.mxu0 0
        %1403 = vmatprep.subr.bf16.mxu0 0
        %1404 = vmatpush2.bf16.msra.mxu0 0
        %1405 = vmatprep.subr.bf16.mxu0 0
        %1406 = vmatpush2.bf16.msra.mxu0 0
        %1407 = vmatprep.subr.bf16.mxu0 0
        %1408 = vmatpush2.bf16.msra.mxu0 0
        %1409 = vmatprep.subr.bf16.mxu0 0
        %1410 = vmatpush2.bf16.msra.mxu0 0
        %1411 = vmatprep.subr.bf16.mxu0 0
        %1412 = vmatpush2.bf16.msra.mxu0 0
        %1413 = vmatprep.subr.bf16.mxu0 0
        %1414 = vmatpush2.bf16.msra.mxu0 0
        %1415 = vmatprep.mubr.bf16.mxu0 0
        %1416 = vmatmul.mubr.bf16.gmra.mxu0 %v1311
        %v1417 = vpop.f32.mrf.mxu0
        %v1418 = vadd.f32 %v1333, %v1417
        %v1419 = vpop.f32.mrf.mxu0
        %v1420 = vpop.f32.mrf.mxu0
        %v1421 = vpop.f32.mrf.mxu0
        %1422 = vdwg.mxu0
        %v1423 = vadd.f32 %v1209, %v1418
        %1424 = vst.msk [vmem:[%s426] sm:$0xff] %vm439, %v1423
        %s1425 = sand.u32 %s307, 1
        %s1426 = scalar_lea.sflag [#allocation5], %s1425
        %s1427 = sand.u32 %s307, 1
        %s1428 = smul.addr %s1427, 8
        %s1429 = scalar_lea.vmem [#allocation4], %s1428
        // Predicated region
        $region97: #{tpu_custom_call.1} parent=67 // pred_check
          %p1430 = pneg %p317
        $region98: #{tpu_custom_call.1} parent=67 // pred_check_branch
          %1432 = sbr.rel (%p1430) target = $region100
        $region99: #{tpu_custom_call.1} parent=67 // pred_region
          %s1434 = ssub.s32 128, 128
          %1435 = vsyncadd %s1426, %s1434
          %s1436 = sadd.s32 %s31, %s30
          %s1437 = smul.addr %s1436, 128
          %s1438 = scalar_lea.hbm %s12, %s1437
          %s1440 = sshll.u32 %s1429, 4
          %s1441 = int_to_ptr.vmem [resolvable:$true] %s1440
          %1443 = dma.vmem_to_hbm [thread:$0]  %s1441, 128, %s1438, %s1426
        $region100: #{tpu_custom_call.1} parent=67 // pred_fallthru
          _
      $region68: #{tpu_custom_call.1} parent=5 // pred_fallthru
        _
      %p1444 = scmp.le.s32.totalorder 2, %s21
      // Predicated region
      $region101: #{tpu_custom_call.1} parent=5 // pred_check
        %p1445 = pneg %p1444
      $region102: #{tpu_custom_call.1} parent=5 // pred_check_branch
        %1447 = sbr.rel (%p1445) target = $region104
      $region103: #{tpu_custom_call.1} parent=5 // pred_region
        %s1448 = ssub.s32 %s21, 2
        // Predicated region
        $region105: #{tpu_custom_call.1} parent=103 // pred_check
          %p1449 = pneg %p323
        $region106: #{tpu_custom_call.1} parent=103 // pred_check_branch
          %1451 = sbr.rel (%p1449) target = $region108
        $region107: #{tpu_custom_call.1} parent=103 // pred_region
          %s1452 = sand.u32 %s308, 1
          %s1453 = scalar_lea.sflag [#allocation5], %s1452
          %s1454 = sand.u32 %s308, 1
          %s1455 = smul.addr %s1454, 8
          %s1456 = scalar_lea.vmem [#allocation4], %s1455
          %1457 = dma.done %s1453, 128
        $region108: #{tpu_custom_call.1} parent=103 // pred_fallthru
          _
      $region104: #{tpu_custom_call.1} parent=5 // pred_fallthru
        _
    $region6: #{tpu_custom_call.1} parent=1 // loop_footer
      %s25 = sadd.s32 1, %s21
    $region7: #{tpu_custom_call.1} parent=1 // loop_footer_branch
      %20 = sbr.rel target = $region3
    $region8: #{tpu_custom_call.1} parent=1 // loop_exit
      _
    %1458 = vsyncpa [#allocation5], 1
    %s1459 = scalar_lea.sflag [#allocation5], 1
    %1460 = vsyncpa %s1459, 1

</llo_original>
